<compile_context>
chip_gen: v5e
topology: v5e:2x2
jax: 0.10.0
libtpu: 0.0.40
codegen_flags: <defaults>
</compile_context>

<pallas_src>
import functools
import math

import jax
import jax.numpy as jnp
from jax import lax
from jax.experimental import pallas as pl
from jax.experimental.pallas import tpu as pltpu


def _qkv_projection_kernel(x_ref, wqkv_ref, bqkv_ref, q_ref, k_ref, v_ref):
    """Fused QKV projection for one (batch, seq-tile) grid step.

    x_ref:     (1, C, TS) f32  channels-first slab of the input.
    wqkv_ref:  (C, 3C)    bf16 [W_q/sqrt(C) | W_k | W_v], (in, out) layout.
    bqkv_ref:  (1, 3C)    f32  [b_q/sqrt(C) | b_k | b_v].
    q/k/v_ref: (1, TS, C) bf16 token-layout outputs.
    """
    c = x_ref.shape[1]
    # NCHW -> token transpose happens on a bf16 VMEM tile (half the XLU work
    # of an f32 transpose) instead of an HBM read+write transpose outside.
    x_tok = jnp.transpose(x_ref[0].astype(jnp.bfloat16), (1, 0))   # (TS, C)
    qkv = jnp.dot(x_tok, wqkv_ref[...],
                  preferred_element_type=jnp.float32)              # (TS, 3C)
    qkv = qkv + bqkv_ref[...]
    q_ref[0] = qkv[:, :c].astype(q_ref.dtype)
    k_ref[0] = qkv[:, c:2 * c].astype(k_ref.dtype)
    v_ref[0] = qkv[:, 2 * c:].astype(v_ref.dtype)


def _attention_kernel(q_ref, k_ref, v_ref, xres_ref, wo_ref, bo_ref, o_ref):
    """Attention (full K/V resident) + out-projection + residual per q-tile.

    q_ref:    (1, TQ, C) bf16 (already scaled by 1/sqrt(C)).
    k_ref:    (1, S,  C) bf16 full-sequence, resident across q-tiles.
    v_ref:    (1, S,  C) bf16 full-sequence, resident across q-tiles.
    xres_ref: (1, C, TQ) f32  channels-first residual slab.
    wo_ref:   (C, C)     bf16 (out, in) layout.
    bo_ref:   (C, 1)     f32.
    o_ref:    (1, C, TQ) f32  channels-first output slab.
    """
    q = q_ref[0]                                                 # (TQ, C)
    k = k_ref[0]                                                 # (S, C)
    v = v_ref[0]                                                 # (S, C)

    # Scores: contract the last axes of q and k (no explicit k.T transpose).
    s = lax.dot_general(q, k, (((1,), (1,)), ((), ())),
                        preferred_element_type=jnp.float32)      # (TQ, S)

    # Single softmax over the full kv extent -- no online-softmax rescale.
    m = jnp.max(s, axis=-1, keepdims=True)
    p = jnp.exp(s - m)                                           # (TQ, S) f32
    l = jnp.sum(p, axis=-1, keepdims=True)

    pv = lax.dot_general(p.astype(jnp.bfloat16), v,
                         (((1,), (0,)), ((), ())),
                         preferred_element_type=jnp.float32)     # (TQ, C) f32
    inv_l = pl.reciprocal(l, approx=True)                        # EUP, ~free
    attn = (pv * inv_l).astype(jnp.bfloat16)                     # (TQ, C)

    # out[c_out, s] = sum_ci wo[c_out, ci] * attn[s, ci] -> (C, TQ): produced
    # directly in channels-first layout, so bias + residual + store need no
    # transpose and the store stays lane-dense (last dim TQ >= 128).
    out_cs = lax.dot_general(wo_ref[...], attn, (((1,), (1,)), ((), ())),
                             preferred_element_type=jnp.float32)
    o_ref[0] = (out_cs + bo_ref[...] + xres_ref[0]).astype(o_ref.dtype)


def _vmem_budget(estimate_bytes):
    """Truthful-ish VMEM budget: 2x the estimated footprint, floored at
    24 MiB, capped at 56 MiB so the same build fits v7x's 64 MiB/TC VMEM.
    On v5e/v6e (128 MiB) the cap may be raised toward ~96-100 MiB to keep
    K/V fully resident at very long sequence lengths."""
    cap = 56 * 1024 * 1024
    floor = 24 * 1024 * 1024
    return int(min(cap, max(floor, 2 * estimate_bytes)))


@functools.partial(jax.jit, static_argnames=("ts", "tq"))
def vae_attention_block(x, params, *, ts=1024, tq=512):
    """x: (N, C, H, W) float32 -> (N, C, H, W) float32."""
    n, c, h, w = x.shape
    s = h * w
    wq, wk, wv, bq, bk, bv, wo, bo = params

    ts = min(ts, s)
    tq = min(tq, s)
    if (s % ts) or (s % tq):
        raise ValueError("H*W must be divisible by the sequence tile sizes")

    scale = 1.0 / math.sqrt(c)
    # Fused QKV weight/bias, with the 1/sqrt(C) score scale folded into q.
    w_qkv = jnp.concatenate([wq * scale, wk, wv], axis=1).astype(jnp.bfloat16)
    b_qkv = jnp.concatenate([bq * scale, bk, bv], axis=1)        # (1, 3C) f32
    wo_oi = jnp.transpose(wo).astype(jnp.bfloat16)               # (Cout, Cin)
    bo_col = jnp.reshape(bo, (c, 1))                             # (C, 1) f32

    x_cs = x.reshape(n, c, s)                                    # free view

    # ---- Kernel 1: fused QKV projection -> token-layout bf16 q, k, v ----
    k1_vmem = (2 * c * ts * 4                # x block, double-buffered f32
               + c * 3 * c * 2 + 3 * c * 4   # resident W_qkv / b_qkv
               + 2 * 3 * ts * c * 2          # q/k/v out blocks, double-buf
               + ts * 3 * c * 4              # in-kernel qkv f32 intermediate
               + ts * c * 2)                 # bf16 transposed x tile
    q_tok, k_tok, v_tok = pl.pallas_call(
        _qkv_projection_kernel,
        out_shape=(
            jax.ShapeDtypeStruct((n, s, c), jnp.bfloat16),
            jax.ShapeDtypeStruct((n, s, c), jnp.bfloat16),
            jax.ShapeDtypeStruct((n, s, c), jnp.bfloat16),
        ),
        grid_spec=pltpu.PrefetchScalarGridSpec(
            num_scalar_prefetch=0,
            grid=(n, s // ts),
            in_specs=[
                pl.BlockSpec((1, c, ts), lambda b, i: (b, 0, i)),    # x (NCS)
                pl.BlockSpec((c, 3 * c), lambda b, i: (0, 0)),       # W_qkv
                pl.BlockSpec((1, 3 * c), lambda b, i: (0, 0)),       # b_qkv
            ],
            out_specs=[
                pl.BlockSpec((1, ts, c), lambda b, i: (b, i, 0)),    # q
                pl.BlockSpec((1, ts, c), lambda b, i: (b, i, 0)),    # k
                pl.BlockSpec((1, ts, c), lambda b, i: (b, i, 0)),    # v
            ],
        ),
        compiler_params=pltpu.CompilerParams(
            dimension_semantics=("parallel", "parallel"),
            vmem_limit_bytes=_vmem_budget(k1_vmem)),
    )(x_cs, w_qkv, b_qkv)

    # ---- Kernel 2: attention (resident K/V) + out-projection + residual ----
    # K/V index maps depend only on the batch axis, so Pallas fetches each
    # batch's K and V from HBM exactly once and reuses the VMEM copy across
    # all q-tiles (no per-q-tile re-streaming).  For very long sequences on
    # v7x (S ~ 16K, C ~ 512) re-introduce a kv tiling instead.
    k2_vmem = (2 * tq * c * 2                # q block, double-buffered bf16
               + 2 * 2 * s * c * 2           # K and V, double-buffered bf16
               + 2 * c * tq * 4              # residual block, f32
               + c * c * 2 + c * 4           # W_out / b_out
               + 2 * c * tq * 4              # output block, f32
               + 2 * tq * s * 4 + tq * s * 2 # scores f32, exp, p bf16
               + 2 * tq * c * 4)             # pv / attn intermediates
    out_cs = pl.pallas_call(
        _attention_kernel,
        out_shape=jax.ShapeDtypeStruct((n, c, s), x.dtype),
        grid_spec=pltpu.PrefetchScalarGridSpec(
            num_scalar_prefetch=0,
            grid=(n, s // tq),
            in_specs=[
                pl.BlockSpec((1, tq, c), lambda b, qi: (b, qi, 0)),  # q
                pl.BlockSpec((1, s, c), lambda b, qi: (b, 0, 0)),    # K (all)
                pl.BlockSpec((1, s, c), lambda b, qi: (b, 0, 0)),    # V (all)
                pl.BlockSpec((1, c, tq), lambda b, qi: (b, 0, qi)),  # residual
                pl.BlockSpec((c, c), lambda b, qi: (0, 0)),          # W_out
                pl.BlockSpec((c, 1), lambda b, qi: (0, 0)),          # b_out
            ],
            out_specs=pl.BlockSpec((1, c, tq), lambda b, qi: (b, 0, qi)),
        ),
        compiler_params=pltpu.CompilerParams(
            dimension_semantics=("parallel", "parallel"),
            vmem_limit_bytes=_vmem_budget(k2_vmem)),
    )(q_tok, k_tok, v_tok, x_cs, wo_oi, bo_col)

    return out_cs.reshape(n, c, h, w)


def reference(x, params):
    """Pure-JAX f32 reference mirroring the PyTorch forward pass."""
    n, c, h, w = x.shape
    s = h * w
    wq, wk, wv, bq, bk, bv, wo, bo = params
    xt = jnp.transpose(x.reshape(n, c, s), (0, 2, 1))            # (N, S, C)
    q = xt @ wq + bq
    k = xt @ wk + bk
    v = xt @ wv + bv
    scores = jnp.einsum("nsc,ntc->nst", q, k) / jnp.sqrt(jnp.float32(c))
    p = jax.nn.softmax(scores, axis=-1)
    attn = jnp.einsum("nst,ntc->nsc", p, v)
    out = attn @ wo + bo + xt
    return jnp.transpose(out, (0, 2, 1)).reshape(n, c, h, w)


if __name__ == "__main__":
    # Channels must be divisible by 32 for GroupNorm(32, C) to construct;
    # C=128 keeps every block lane-dense, S = 16*16 = 256 with tq=ts=128
    # exercises multiple seq/q tiles (kernel-2 grid (2, 2)) and the resident
    # K/V reuse across q-tiles.
    N, C, H, W = 2, 128, 16, 16
    key = jax.random.PRNGKey(0)
    keys = jax.random.split(key, 10)

    x = jax.random.normal(keys[0], (N, C, H, W), jnp.float32)

    # Deterministic nn.Linear-style init: U(-1/sqrt(fan_in), 1/sqrt(fan_in)).
    bound = 1.0 / math.sqrt(C)

    def u(k, shape):
        return jax.random.uniform(k, shape, jnp.float32, -bound, bound)

    # in_proj = Linear(C, 3C) chunked into q/k/v (stored as (in, out) here).
    wq = u(keys[1], (C, C))
    wk = u(keys[2], (C, C))
    wv = u(keys[3], (C, C))
    bq = u(keys[4], (1, C))
    bk = u(keys[5], (1, C))
    bv = u(keys[6], (1, C))
    # out_proj = Linear(C, C)
    wo = u(keys[7], (C, C))
    bo = u(keys[8], (1, C))

    # GroupNorm(32, C) parameters exist in __init__ but forward() never uses
    # them, so they are (faithfully) not applied.
    gn_gamma = jnp.ones((C,), jnp.float32)
    gn_beta = jnp.zeros((C,), jnp.float32)

    params = (wq, wk, wv, bq, bk, bv, wo, bo)

    # Small tiles for the small demo sequence; production defaults are
    # ts=1024, tq=512 with full-sequence resident K/V (sized so the 56 MiB
    # VMEM cap fits v7x; raise the cap on v5e/v6e for very long sequences).
    out = vae_attention_block(x, params, ts=128, tq=128)
    jax.block_until_ready(out)

    ref = reference(x, params)
    assert out.shape == (N, C, H, W)
    # Tolerance accounts for bf16 MXU operands (f32 accumulation throughout)
    # and the approx reciprocal in the softmax normalization.
    assert jnp.allclose(out, ref, atol=2e-2, rtol=2e-2), "mismatch vs reference"

    print("KERNEL_OK")
</pallas_src>

<mosaic_0001>
module attributes {stable_mosaic.version = 11 : i64} {
  func.func @_attention_kernel(%arg0: i32, %arg1: i32, %arg2: memref<1x128x128xbf16, #tpu.memory_space<vmem>>, %arg3: memref<1x256x128xbf16, #tpu.memory_space<vmem>>, %arg4: memref<1x256x128xbf16, #tpu.memory_space<vmem>>, %arg5: memref<1x128x128xf32, #tpu.memory_space<vmem>>, %arg6: memref<128x128xbf16, #tpu.memory_space<vmem>>, %arg7: memref<128x1xf32, #tpu.memory_space<vmem>>, %arg8: memref<1x128x128xf32, #tpu.memory_space<vmem>>) attributes {dimension_semantics = [#tpu.dimension_semantics<parallel>, #tpu.dimension_semantics<parallel>], iteration_bounds = array<i64: 2, 2>, scalar_prefetch = 0 : i64, scratch_operands = 0 : i64, tpu.core_type = #tpu.core_type<tc>, window_params = [{transform_indices = @transform_0, window_bounds = array<i64: 1, 128, 128>}, {transform_indices = @transform_1, window_bounds = array<i64: 1, 256, 128>}, {transform_indices = @transform_2, window_bounds = array<i64: 1, 256, 128>}, {transform_indices = @transform_3, window_bounds = array<i64: 1, 128, 128>}, {pipeline_mode = #tpu.pipeline_mode<synchronous>, transform_indices = @transform_4, window_bounds = array<i64: 128, 128>}, {pipeline_mode = #tpu.pipeline_mode<synchronous>, transform_indices = @transform_5, window_bounds = array<i64: 128, 1>}, {transform_indices = @transform_6, window_bounds = array<i64: 1, 128, 128>}]} {
    %c0 = arith.constant 0 : index
    %c0_0 = arith.constant 0 : index
    %c0_1 = arith.constant 0 : index
    %0 = vector.load %arg2[%c0, %c0_0, %c0_1] : memref<1x128x128xbf16, #tpu.memory_space<vmem>>, vector<1x128x128xbf16>
    %1 = vector.shape_cast %0 : vector<1x128x128xbf16> to vector<128x128xbf16>
    %c0_2 = arith.constant 0 : index
    %c0_3 = arith.constant 0 : index
    %c0_4 = arith.constant 0 : index
    %2 = vector.load %arg3[%c0_2, %c0_3, %c0_4] : memref<1x256x128xbf16, #tpu.memory_space<vmem>>, vector<1x256x128xbf16>
    %3 = vector.shape_cast %2 : vector<1x256x128xbf16> to vector<256x128xbf16>
    %c0_5 = arith.constant 0 : index
    %c0_6 = arith.constant 0 : index
    %c0_7 = arith.constant 0 : index
    %4 = vector.load %arg4[%c0_5, %c0_6, %c0_7] : memref<1x256x128xbf16, #tpu.memory_space<vmem>>, vector<1x256x128xbf16>
    %5 = vector.shape_cast %4 : vector<1x256x128xbf16> to vector<256x128xbf16>
    %cst = arith.constant dense<0.000000e+00> : vector<128x256xf32>
    %6 = tpu.matmul %1, %3, %cst {dimension_numbers = #tpu.dot_dimension_numbers<[1], [1], [0], [0], [0, 0, 1, 0], [], []>} : vector<128x128xbf16>, vector<256x128xbf16>, vector<128x256xf32> -> vector<128x256xf32>
    %cst_8 = arith.constant dense<0xFF800000> : vector<128xf32>
    %7 = vector.multi_reduction <maximumf>, %6, %cst_8 [1] : vector<128x256xf32> to vector<128xf32>
    %8 = vector.shape_cast %7 : vector<128xf32> to vector<128x1xf32>
    %9 = vector.broadcast %8 : vector<128x1xf32> to vector<128x256xf32>
    %10 = arith.subf %6, %9 : vector<128x256xf32>
    %11 = math.exp %10 : vector<128x256xf32>
    %cst_9 = arith.constant dense<0.000000e+00> : vector<128xf32>
    %12 = vector.multi_reduction <add>, %11, %cst_9 [1] : vector<128x256xf32> to vector<128xf32>
    %13 = vector.shape_cast %12 : vector<128xf32> to vector<128x1xf32>
    %14 = arith.truncf %11 : vector<128x256xf32> to vector<128x256xbf16>
    %cst_10 = arith.constant dense<0.000000e+00> : vector<128x128xf32>
    %15 = tpu.matmul %14, %5, %cst_10 {dimension_numbers = #tpu.dot_dimension_numbers<[1], [0], [0], [1], [0, 0, 1, 1], [], []>} : vector<128x256xbf16>, vector<256x128xbf16>, vector<128x128xf32> -> vector<128x128xf32>
    %16 = tpu.reciprocal %13 {approx = true} : vector<128x1xf32> -> vector<128x1xf32>
    %17 = vector.broadcast %16 : vector<128x1xf32> to vector<128x128xf32>
    %18 = arith.mulf %15, %17 : vector<128x128xf32>
    %19 = arith.truncf %18 : vector<128x128xf32> to vector<128x128xbf16>
    %c0_11 = arith.constant 0 : index
    %c0_12 = arith.constant 0 : index
    %20 = vector.load %arg6[%c0_11, %c0_12] : memref<128x128xbf16, #tpu.memory_space<vmem>>, vector<128x128xbf16>
    %cst_13 = arith.constant dense<0.000000e+00> : vector<128x128xf32>
    %21 = tpu.matmul %20, %19, %cst_13 {dimension_numbers = #tpu.dot_dimension_numbers<[1], [1], [0], [0], [0, 0, 1, 0], [], []>} : vector<128x128xbf16>, vector<128x128xbf16>, vector<128x128xf32> -> vector<128x128xf32>
    %c0_14 = arith.constant 0 : index
    %c0_15 = arith.constant 0 : index
    %22 = vector.load %arg7[%c0_14, %c0_15] : memref<128x1xf32, #tpu.memory_space<vmem>>, vector<128x1xf32>
    %23 = vector.broadcast %22 : vector<128x1xf32> to vector<128x128xf32>
    %24 = arith.addf %21, %23 : vector<128x128xf32>
    %c0_16 = arith.constant 0 : index
    %c0_17 = arith.constant 0 : index
    %c0_18 = arith.constant 0 : index
    %25 = vector.load %arg5[%c0_16, %c0_17, %c0_18] : memref<1x128x128xf32, #tpu.memory_space<vmem>>, vector<1x128x128xf32>
    %26 = vector.shape_cast %25 : vector<1x128x128xf32> to vector<128x128xf32>
    %27 = arith.addf %24, %26 : vector<128x128xf32>
    %c0_19 = arith.constant 0 : index
    %c0_20 = arith.constant 0 : index
    %c0_21 = arith.constant 0 : index
    %28 = vector.load %arg8[%c0_19, %c0_20, %c0_21] : memref<1x128x128xf32, #tpu.memory_space<vmem>>, vector<1x128x128xf32>
    %29 = vector.shape_cast %28 : vector<1x128x128xf32> to vector<128x128xf32>
    %30 = vector.shape_cast %27 : vector<128x128xf32> to vector<1x128x128xf32>
    tpu.vector_store %arg8[%c0_19, %c0_20, %c0_21], %30 {strides = array<i32>} : memref<1x128x128xf32, #tpu.memory_space<vmem>>, vector<1x128x128xf32>,
    return
  }
  func.func @transform_0(%arg0: i32, %arg1: i32) -> (i32, i32, i32) {
    %c0_i32 = arith.constant 0 : i32
    %c0_i32_0 = arith.constant 0 : i32
    return %arg0, %arg1, %c0_i32 : i32, i32, i32
  }
  func.func @transform_1(%arg0: i32, %arg1: i32) -> (i32, i32, i32) {
    %c0_i32 = arith.constant 0 : i32
    %c0_i32_0 = arith.constant 0 : i32
    %c0_i32_1 = arith.constant 0 : i32
    return %arg0, %c0_i32, %c0_i32_0 : i32, i32, i32
  }
  func.func @transform_2(%arg0: i32, %arg1: i32) -> (i32, i32, i32) {
    %c0_i32 = arith.constant 0 : i32
    %c0_i32_0 = arith.constant 0 : i32
    %c0_i32_1 = arith.constant 0 : i32
    return %arg0, %c0_i32, %c0_i32_0 : i32, i32, i32
  }
  func.func @transform_3(%arg0: i32, %arg1: i32) -> (i32, i32, i32) {
    %c0_i32 = arith.constant 0 : i32
    %c0_i32_0 = arith.constant 0 : i32
    return %arg0, %c0_i32, %arg1 : i32, i32, i32
  }
  func.func @transform_4(%arg0: i32, %arg1: i32) -> (i32, i32) {
    %c0_i32 = arith.constant 0 : i32
    %c0_i32_0 = arith.constant 0 : i32
    %c0_i32_1 = arith.constant 0 : i32
    return %c0_i32, %c0_i32_0 : i32, i32
  }
  func.func @transform_5(%arg0: i32, %arg1: i32) -> (i32, i32) {
    %c0_i32 = arith.constant 0 : i32
    %c0_i32_0 = arith.constant 0 : i32
    %c0_i32_1 = arith.constant 0 : i32
    return %c0_i32, %c0_i32_0 : i32, i32
  }
  func.func @transform_6(%arg0: i32, %arg1: i32) -> (i32, i32, i32) {
    %c0_i32 = arith.constant 0 : i32
    %c0_i32_0 = arith.constant 0 : i32
    return %arg0, %c0_i32, %arg1 : i32, i32, i32
  }
}

module attributes {stable_mosaic.version = 11 : i64} {
  func.func @_qkv_projection_kernel(%arg0: i32, %arg1: i32, %arg2: memref<1x128x128xf32, #tpu.memory_space<vmem>>, %arg3: memref<128x384xbf16, #tpu.memory_space<vmem>>, %arg4: memref<1x384xf32, #tpu.memory_space<vmem>>, %arg5: memref<1x128x128xbf16, #tpu.memory_space<vmem>>, %arg6: memref<1x128x128xbf16, #tpu.memory_space<vmem>>, %arg7: memref<1x128x128xbf16, #tpu.memory_space<vmem>>) attributes {dimension_semantics = [#tpu.dimension_semantics<parallel>, #tpu.dimension_semantics<parallel>], iteration_bounds = array<i64: 2, 2>, scalar_prefetch = 0 : i64, scratch_operands = 0 : i64, tpu.core_type = #tpu.core_type<tc>, window_params = [{transform_indices = @transform_0, window_bounds = array<i64: 1, 128, 128>}, {pipeline_mode = #tpu.pipeline_mode<synchronous>, transform_indices = @transform_1, window_bounds = array<i64: 128, 384>}, {pipeline_mode = #tpu.pipeline_mode<synchronous>, transform_indices = @transform_2, window_bounds = array<i64: 1, 384>}, {transform_indices = @transform_3, window_bounds = array<i64: 1, 128, 128>}, {transform_indices = @transform_4, window_bounds = array<i64: 1, 128, 128>}, {transform_indices = @transform_5, window_bounds = array<i64: 1, 128, 128>}]} {
    %c0 = arith.constant 0 : index
    %c0_0 = arith.constant 0 : index
    %c0_1 = arith.constant 0 : index
    %0 = vector.load %arg2[%c0, %c0_0, %c0_1] : memref<1x128x128xf32, #tpu.memory_space<vmem>>, vector<1x128x128xf32>
    %1 = vector.shape_cast %0 : vector<1x128x128xf32> to vector<128x128xf32>
    %2 = arith.truncf %1 : vector<128x128xf32> to vector<128x128xbf16>
    %3 = tpu.transpose %2, [1, 0] : vector<128x128xbf16> -> vector<128x128xbf16>
    %c0_2 = arith.constant 0 : index
    %c0_3 = arith.constant 0 : index
    %4 = vector.load %arg3[%c0_2, %c0_3] : memref<128x384xbf16, #tpu.memory_space<vmem>>, vector<128x384xbf16>
    %cst = arith.constant dense<0.000000e+00> : vector<128x384xf32>
    %5 = tpu.matmul %3, %4, %cst {dimension_numbers = #tpu.dot_dimension_numbers<[1], [0], [0], [1], [0, 0, 1, 1], [], []>} : vector<128x128xbf16>, vector<128x384xbf16>, vector<128x384xf32> -> vector<128x384xf32>
    %c0_4 = arith.constant 0 : index
    %c0_5 = arith.constant 0 : index
    %6 = vector.load %arg4[%c0_4, %c0_5] : memref<1x384xf32, #tpu.memory_space<vmem>>, vector<1x384xf32>
    %7 = vector.broadcast %6 : vector<1x384xf32> to vector<128x384xf32>
    %8 = arith.addf %5, %7 : vector<128x384xf32>
    %9 = vector.extract_strided_slice %8 {offsets = [0, 0], sizes = [128, 128], strides = [1, 1]} : vector<128x384xf32> to vector<128x128xf32>
    %10 = arith.truncf %9 : vector<128x128xf32> to vector<128x128xbf16>
    %c0_6 = arith.constant 0 : index
    %c0_7 = arith.constant 0 : index
    %c0_8 = arith.constant 0 : index
    %11 = vector.load %arg5[%c0_6, %c0_7, %c0_8] : memref<1x128x128xbf16, #tpu.memory_space<vmem>>, vector<1x128x128xbf16>
    %12 = vector.shape_cast %11 : vector<1x128x128xbf16> to vector<128x128xbf16>
    %13 = vector.shape_cast %10 : vector<128x128xbf16> to vector<1x128x128xbf16>
    tpu.vector_store %arg5[%c0_6, %c0_7, %c0_8], %13 {strides = array<i32>} : memref<1x128x128xbf16, #tpu.memory_space<vmem>>, vector<1x128x128xbf16>,
    %14 = vector.extract_strided_slice %8 {offsets = [0, 128], sizes = [128, 128], strides = [1, 1]} : vector<128x384xf32> to vector<128x128xf32>
    %15 = arith.truncf %14 : vector<128x128xf32> to vector<128x128xbf16>
    %c0_9 = arith.constant 0 : index
    %c0_10 = arith.constant 0 : index
    %c0_11 = arith.constant 0 : index
    %16 = vector.load %arg6[%c0_9, %c0_10, %c0_11] : memref<1x128x128xbf16, #tpu.memory_space<vmem>>, vector<1x128x128xbf16>
    %17 = vector.shape_cast %16 : vector<1x128x128xbf16> to vector<128x128xbf16>
    %18 = vector.shape_cast %15 : vector<128x128xbf16> to vector<1x128x128xbf16>
    tpu.vector_store %arg6[%c0_9, %c0_10, %c0_11], %18 {strides = array<i32>} : memref<1x128x128xbf16, #tpu.memory_space<vmem>>, vector<1x128x128xbf16>,
    %19 = vector.extract_strided_slice %8 {offsets = [0, 256], sizes = [128, 128], strides = [1, 1]} : vector<128x384xf32> to vector<128x128xf32>
    %20 = arith.truncf %19 : vector<128x128xf32> to vector<128x128xbf16>
    %c0_12 = arith.constant 0 : index
    %c0_13 = arith.constant 0 : index
    %c0_14 = arith.constant 0 : index
    %21 = vector.load %arg7[%c0_12, %c0_13, %c0_14] : memref<1x128x128xbf16, #tpu.memory_space<vmem>>, vector<1x128x128xbf16>
    %22 = vector.shape_cast %21 : vector<1x128x128xbf16> to vector<128x128xbf16>
    %23 = vector.shape_cast %20 : vector<128x128xbf16> to vector<1x128x128xbf16>
    tpu.vector_store %arg7[%c0_12, %c0_13, %c0_14], %23 {strides = array<i32>} : memref<1x128x128xbf16, #tpu.memory_space<vmem>>, vector<1x128x128xbf16>,
    return
  }
  func.func @transform_0(%arg0: i32, %arg1: i32) -> (i32, i32, i32) {
    %c0_i32 = arith.constant 0 : i32
    %c0_i32_0 = arith.constant 0 : i32
    return %arg0, %c0_i32, %arg1 : i32, i32, i32
  }
  func.func @transform_1(%arg0: i32, %arg1: i32) -> (i32, i32) {
    %c0_i32 = arith.constant 0 : i32
    %c0_i32_0 = arith.constant 0 : i32
    %c0_i32_1 = arith.constant 0 : i32
    return %c0_i32, %c0_i32_0 : i32, i32
  }
  func.func @transform_2(%arg0: i32, %arg1: i32) -> (i32, i32) {
    %c0_i32 = arith.constant 0 : i32
    %c0_i32_0 = arith.constant 0 : i32
    %c0_i32_1 = arith.constant 0 : i32
    return %c0_i32, %c0_i32_0 : i32, i32
  }
  func.func @transform_3(%arg0: i32, %arg1: i32) -> (i32, i32, i32) {
    %c0_i32 = arith.constant 0 : i32
    %c0_i32_0 = arith.constant 0 : i32
    return %arg0, %arg1, %c0_i32 : i32, i32, i32
  }
  func.func @transform_4(%arg0: i32, %arg1: i32) -> (i32, i32, i32) {
    %c0_i32 = arith.constant 0 : i32
    %c0_i32_0 = arith.constant 0 : i32
    return %arg0, %arg1, %c0_i32 : i32, i32, i32
  }
  func.func @transform_5(%arg0: i32, %arg1: i32) -> (i32, i32, i32) {
    %c0_i32 = arith.constant 0 : i32
    %c0_i32_0 = arith.constant 0 : i32
    return %arg0, %arg1, %c0_i32 : i32, i32, i32
  }
}

</mosaic_0001>

<llo_original>
// kernel: vae_attention_block.2
$region0: #{vae_attention_block.2}
  #allocation0 [shape = 'u32[]', space=smem, size = 0x4, offset = 0x4, fixed_abs, tag = 'smem constant byte address 0x4 - core index']
  #allocation1 [shape = 'u32[72,128]{1,0:T(1,128)}', space=vmem, size = 0x9000, scoped, tag = 'internal scratch']
  %s0 = inlined_call_operand.vmem [shape: f32[2,128,256], index: 0, kind: input, shape index: {}]
  %s1 = inlined_call_operand.vmem [shape: bf16[128,384], index: 1, kind: input, shape index: {}]
  %s2 = inlined_call_operand.vmem [shape: f32[1,384], index: 2, kind: input, shape index: {}]
  %s3 = inlined_call_operand.vmem [shape: bf16[2,256,128], index: 3, kind: output, shape index: {0}]
  %s4 = inlined_call_operand.vmem [shape: bf16[2,256,128], index: 4, kind: output, shape index: {1}]
  %s5 = inlined_call_operand.vmem [shape: bf16[2,256,128], index: 5, kind: output, shape index: {2}]
  %6 = xla_tuple %s3, %s4, %s5
  %s7 = sld [smem:[#allocation0]]
  $region99: #{vae_attention_block.2} parent=0
    _
  %s9 = ssub.s32 1, %s7
  %s10 = scalar_select 0, %s9, %s7
  $region1: #{vae_attention_block.2} parent=0
    #allocation2 [shape = 'u8[131072]{0}', space=vmem, size = 0x20000, scoped, tag = 'input window, operand 0']
    loop: start=0, step=1, limit=6
    $region2: #{vae_attention_block.2} parent=1 // loop_pre_header
      _
    $region3: #{vae_attention_block.2} parent=1 // loop_header
      %s12 = sphi 0, %s16
      %p13 = scmp.ge.s32.totalorder %s12, 6
      %s19 = sphi 0, %s31
      %s20 = sphi 0, %s27
      %s21 = sphi 0, %s19
      %s22 = sphi 0, %s20
      %s23 = sphi 0, %s21
      %s24 = sphi 0, %s22
      %s36 = sphi 0, %s38
      %s39 = sphi 0, %s36
      %s40 = sphi 0, %s39
      %s56 = sphi 0, %s40
      %s60 = sphi 0, %s60
      %s62 = sphi 0, %s60
      %s63 = sphi 0, %s62
      %s77 = sphi 0, %s63
      %s81 = sphi 0, %s81
      %s83 = sphi 0, %s81
      %s84 = sphi 0, %s83
      %s98 = sphi 0, %s84
      %s106 = sphi 0, %s108
      %s109 = sphi 0, %s106
      %s110 = sphi 0, %s109
      %s126 = sphi 0, %s110
      %s134 = sphi 0, %s136
      %s137 = sphi 0, %s134
      %s138 = sphi 0, %s137
      %s154 = sphi 0, %s138
      %s162 = sphi 0, %s164
      %s165 = sphi 0, %s162
      %s166 = sphi 0, %s165
      %s182 = sphi 0, %s166
    $region4: #{vae_attention_block.2} parent=1 // loop_header_branch
      %15 = sbr.rel (%p13) target = $region8
    $region5: #{vae_attention_block.2} parent=1 // loop_body
      %s17 = ssub.s32 %s12, 1
      %s18 = ssub.s32 %s12, 2
      %s25 = sadd.s32 1, %s20
      %p26 = scmp.ge.s32.totalorder %s25, 2
      %s27 = scalar_select %p26, 0, %s25
      %s28 = sadd.s32 1, %s19
      %s29 = scalar_select %p26, %s28, %s19
      %p30 = scmp.ge.s32.totalorder %s29, 2
      %s31 = scalar_select %p30, 0, %s29
      %s32 = ssub.s32 %s19, %s31
      %s33 = ssub.s32 %s20, %s27
      %s34 = sor.u32 %s32, %s33
      %p35 = scmp.eq.s32.totalorder %s34, 0
      %s37 = sadd.s32 %s36, 1
      %s38 = scalar_select %p35, %s36, %s37
      %p41 = pneg %p35
      %p42 = scmp.eq.s32.totalorder %s12, 3
      %p43 = por %p41, %p42
      %p44 = scmp.ne.s32.totalorder %s36, %s39
      %p45 = scmp.eq.s32.totalorder %s12, 0
      %p46 = por %p44, %p45
      %p47 = scmp.ne.s32.totalorder %s36, %s39
      %p48 = scmp.eq.s32.totalorder %s17, 3
      %p49 = por %p47, %p48
      %p50 = scmp.ne.s32.totalorder %s39, %s40
      %p51 = scmp.eq.s32.totalorder %s17, 0
      %p52 = por %p50, %p51
      %p53 = scmp.ne.s32.totalorder %s39, %s40
      %p54 = scmp.eq.s32.totalorder %s18, 3
      %p55 = por %p53, %p54
      %p57 = scmp.ne.s32.totalorder %s40, %s56
      %p58 = scmp.eq.s32.totalorder %s18, 0
      %p59 = por %p57, %p58
      %s61 = sadd.s32 %s60, 1
      %p64 = scmp.eq.s32.totalorder %s12, 3
      %p65 = scmp.ne.s32.totalorder %s60, %s62
      %p66 = scmp.eq.s32.totalorder %s12, 0
      %p67 = por %p65, %p66
      %p68 = scmp.ne.s32.totalorder %s60, %s62
      %p69 = scmp.eq.s32.totalorder %s17, 3
      %p70 = por %p68, %p69
      %p71 = scmp.ne.s32.totalorder %s62, %s63
      %p72 = scmp.eq.s32.totalorder %s17, 0
      %p73 = por %p71, %p72
      %p74 = scmp.ne.s32.totalorder %s62, %s63
      %p75 = scmp.eq.s32.totalorder %s18, 3
      %p76 = por %p74, %p75
      %p78 = scmp.ne.s32.totalorder %s63, %s77
      %p79 = scmp.eq.s32.totalorder %s18, 0
      %p80 = por %p78, %p79
      %s82 = sadd.s32 %s81, 1
      %p85 = scmp.eq.s32.totalorder %s12, 3
      %p86 = scmp.ne.s32.totalorder %s81, %s83
      %p87 = scmp.eq.s32.totalorder %s12, 0
      %p88 = por %p86, %p87
      %p89 = scmp.ne.s32.totalorder %s81, %s83
      %p90 = scmp.eq.s32.totalorder %s17, 3
      %p91 = por %p89, %p90
      %p92 = scmp.ne.s32.totalorder %s83, %s84
      %p93 = scmp.eq.s32.totalorder %s17, 0
      %p94 = por %p92, %p93
      %p95 = scmp.ne.s32.totalorder %s83, %s84
      %p96 = scmp.eq.s32.totalorder %s18, 3
      %p97 = por %p95, %p96
      %p99 = scmp.ne.s32.totalorder %s84, %s98
      %p100 = scmp.eq.s32.totalorder %s18, 0
      %p101 = por %p99, %p100
      %s102 = ssub.s32 %s19, %s31
      %s103 = ssub.s32 %s20, %s27
      %s104 = sor.u32 %s102, %s103
      %p105 = scmp.eq.s32.totalorder %s104, 0
      %s107 = sadd.s32 %s106, 1
      %s108 = scalar_select %p105, %s106, %s107
      %p111 = pneg %p105
      %p112 = scmp.eq.s32.totalorder %s12, 3
      %p113 = por %p111, %p112
      %p114 = scmp.ne.s32.totalorder %s106, %s109
      %p115 = scmp.eq.s32.totalorder %s12, 0
      %p116 = por %p114, %p115
      %p117 = scmp.ne.s32.totalorder %s106, %s109
      %p118 = scmp.eq.s32.totalorder %s17, 3
      %p119 = por %p117, %p118
      %p120 = scmp.ne.s32.totalorder %s109, %s110
      %p121 = scmp.eq.s32.totalorder %s17, 0
      %p122 = por %p120, %p121
      %p123 = scmp.ne.s32.totalorder %s109, %s110
      %p124 = scmp.eq.s32.totalorder %s18, 3
      %p125 = por %p123, %p124
      %p127 = scmp.ne.s32.totalorder %s110, %s126
      %p128 = scmp.eq.s32.totalorder %s18, 0
      %p129 = por %p127, %p128
      %s130 = ssub.s32 %s19, %s31
      %s131 = ssub.s32 %s20, %s27
      %s132 = sor.u32 %s130, %s131
      %p133 = scmp.eq.s32.totalorder %s132, 0
      %s135 = sadd.s32 %s134, 1
      %s136 = scalar_select %p133, %s134, %s135
      %p139 = pneg %p133
      %p140 = scmp.eq.s32.totalorder %s12, 3
      %p141 = por %p139, %p140
      %p142 = scmp.ne.s32.totalorder %s134, %s137
      %p143 = scmp.eq.s32.totalorder %s12, 0
      %p144 = por %p142, %p143
      %p145 = scmp.ne.s32.totalorder %s134, %s137
      %p146 = scmp.eq.s32.totalorder %s17, 3
      %p147 = por %p145, %p146
      %p148 = scmp.ne.s32.totalorder %s137, %s138
      %p149 = scmp.eq.s32.totalorder %s17, 0
      %p150 = por %p148, %p149
      %p151 = scmp.ne.s32.totalorder %s137, %s138
      %p152 = scmp.eq.s32.totalorder %s18, 3
      %p153 = por %p151, %p152
      %p155 = scmp.ne.s32.totalorder %s138, %s154
      %p156 = scmp.eq.s32.totalorder %s18, 0
      %p157 = por %p155, %p156
      %s158 = ssub.s32 %s19, %s31
      %s159 = ssub.s32 %s20, %s27
      %s160 = sor.u32 %s158, %s159
      %p161 = scmp.eq.s32.totalorder %s160, 0
      %s163 = sadd.s32 %s162, 1
      %s164 = scalar_select %p161, %s162, %s163
      %p167 = pneg %p161
      %p168 = scmp.eq.s32.totalorder %s12, 3
      %p169 = por %p167, %p168
      %p170 = scmp.ne.s32.totalorder %s162, %s165
      %p171 = scmp.eq.s32.totalorder %s12, 0
      %p172 = por %p170, %p171
      %p173 = scmp.ne.s32.totalorder %s162, %s165
      %p174 = scmp.eq.s32.totalorder %s17, 3
      %p175 = por %p173, %p174
      %p176 = scmp.ne.s32.totalorder %s165, %s166
      %p177 = scmp.eq.s32.totalorder %s17, 0
      %p178 = por %p176, %p177
      %p179 = scmp.ne.s32.totalorder %s165, %s166
      %p180 = scmp.eq.s32.totalorder %s18, 3
      %p181 = por %p179, %p180
      %p183 = scmp.ne.s32.totalorder %s166, %s182
      %p184 = scmp.eq.s32.totalorder %s18, 0
      %p185 = por %p183, %p184
      %p186 = scmp.le.s32.totalorder 1, %s12
      %p187 = scmp.lt.s32.totalorder %s12, 5
      %p188 = pnand %p186, %p187
      %p189 = pneg %p188
      // Predicated region
      $region9: #{vae_attention_block.2} parent=5 // pred_check
        _
      $region10: #{vae_attention_block.2} parent=5 // pred_check_branch
        %191 = sbr.rel (%p188) target = $region12
      $region11: #{vae_attention_block.2} parent=5 // pred_region
        %s192 = ssub.s32 %s12, 1
        // Predicated region
        $region13: #{vae_attention_block.2} parent=11 // pred_check
          %p193 = pneg %p73
        $region14: #{vae_attention_block.2} parent=11 // pred_check_branch
          %195 = sbr.rel (%p193) target = $region16
        $region15: #{vae_attention_block.2} parent=11 // pred_region
          _
        $region16: #{vae_attention_block.2} parent=11 // pred_fallthru
          _
        // Predicated region
        $region17: #{vae_attention_block.2} parent=11 // pred_check
          %p196 = pneg %p94
        $region18: #{vae_attention_block.2} parent=11 // pred_check_branch
          %198 = sbr.rel (%p196) target = $region20
        $region19: #{vae_attention_block.2} parent=11 // pred_region
          _
        $region20: #{vae_attention_block.2} parent=11 // pred_fallthru
          _
      $region12: #{vae_attention_block.2} parent=5 // pred_fallthru
        _
      %p199 = scmp.lt.s32.totalorder %s12, 4
      // Predicated region
      $region21: #{vae_attention_block.2} parent=5 // pred_check
        %p200 = pneg %p199
      $region22: #{vae_attention_block.2} parent=5 // pred_check_branch
        %202 = sbr.rel (%p200) target = $region24
      $region23: #{vae_attention_block.2} parent=5 // pred_region
        // Predicated region
        $region25: #{vae_attention_block.2} parent=23 // pred_check
          %p203 = pneg %p46
        $region26: #{vae_attention_block.2} parent=23 // pred_check_branch
          %205 = sbr.rel (%p203) target = $region28
        $region27: #{vae_attention_block.2} parent=23 // pred_region
          %s206 = sand.u32 %s36, 1
          %s207 = sand.u32 %s36, 1
          %s208 = smul.addr %s207, 128
          %s209 = scalar_lea.vmem [#allocation2], %s208
          %s210 = smul.addr %s19, 32
          %s211 = sadd.s32 %s20, %s210
          %s212 = smul.addr %s211, 8
          %s213 = scalar_lea.vmem %s0, %s212
          // Predicated region
          $region29: #{vae_attention_block.2} parent=27 // pred_check
            _
          $region30: #{vae_attention_block.2} parent=27 // pred_check_branch
            %215 = sbr.rel (0) target = $region32
          $region31: #{vae_attention_block.2} parent=27 // pred_region
            // Predicated region
            $region33: #{vae_attention_block.2} parent=31 // pred_check
              _
            $region34: #{vae_attention_block.2} parent=31 // pred_check_branch
              %217 = sbr.rel (0) target = $region36
            $region35: #{vae_attention_block.2} parent=31 // pred_region
              // Predicated region
              $region48: #{vae_attention_block.2} parent=35 // pred_check
                _
              $region49: #{vae_attention_block.2} parent=35 // pred_check_branch
                %263 = sbr.rel (0) target = $region51
              $region50: #{vae_attention_block.2} parent=35 // pred_region
                loop: start=0, step=1, limit=1
                $region52: #{vae_attention_block.2} parent=50 // loop_pre_header
                  _
                $region53: #{vae_attention_block.2} parent=50 // loop_header
                  %s265 = sphi 0, %s269
                  %p266 = scmp.ge.s32.totalorder %s265, 1
                  %s270 = sphi %s213, %s213
                  %s271 = sphi %s209, %s209
                $region54: #{vae_attention_block.2} parent=50 // loop_header_branch
                  %268 = sbr.rel (%p266) target = $region58
                $region55: #{vae_attention_block.2} parent=50 // loop_body
                  %v272 = vld [vmem:[%s270] sm:$0xff]
                  %273 = vst [vmem:[%s271] sm:$0xff] %v272
                  %v274 = vld [vmem:[%s270 + $0x10] sm:$0xff]
                  %275 = vst [vmem:[%s271 + $0x8] sm:$0xff] %v274
                  %v276 = vld [vmem:[%s270 + $0x20] sm:$0xff]
                  %277 = vst [vmem:[%s271 + $0x10] sm:$0xff] %v276
                  %v278 = vld [vmem:[%s270 + $0x30] sm:$0xff]
                  %279 = vst [vmem:[%s271 + $0x18] sm:$0xff] %v278
                  %v280 = vld [vmem:[%s270 + $0x40] sm:$0xff]
                  %281 = vst [vmem:[%s271 + $0x20] sm:$0xff] %v280
                  %v282 = vld [vmem:[%s270 + $0x50] sm:$0xff]
                  %283 = vst [vmem:[%s271 + $0x28] sm:$0xff] %v282
                  %v284 = vld [vmem:[%s270 + $0x60] sm:$0xff]
                  %285 = vst [vmem:[%s271 + $0x30] sm:$0xff] %v284
                  %v286 = vld [vmem:[%s270 + $0x70] sm:$0xff]
                  %287 = vst [vmem:[%s271 + $0x38] sm:$0xff] %v286
                  %v288 = vld [vmem:[%s270 + $0x80] sm:$0xff]
                  %289 = vst [vmem:[%s271 + $0x40] sm:$0xff] %v288
                  %v290 = vld [vmem:[%s270 + $0x90] sm:$0xff]
                  %291 = vst [vmem:[%s271 + $0x48] sm:$0xff] %v290
                  %v292 = vld [vmem:[%s270 + $0xa0] sm:$0xff]
                  %293 = vst [vmem:[%s271 + $0x50] sm:$0xff] %v292
                  %v294 = vld [vmem:[%s270 + $0xb0] sm:$0xff]
                  %295 = vst [vmem:[%s271 + $0x58] sm:$0xff] %v294
                  %v296 = vld [vmem:[%s270 + $0xc0] sm:$0xff]
                  %297 = vst [vmem:[%s271 + $0x60] sm:$0xff] %v296
                  %v298 = vld [vmem:[%s270 + $0xd0] sm:$0xff]
                  %299 = vst [vmem:[%s271 + $0x68] sm:$0xff] %v298
                  %v300 = vld [vmem:[%s270 + $0xe0] sm:$0xff]
                  %301 = vst [vmem:[%s271 + $0x70] sm:$0xff] %v300
                  %v302 = vld [vmem:[%s270 + $0xf0] sm:$0xff]
                  %303 = vst [vmem:[%s271 + $0x78] sm:$0xff] %v302
                $region56: #{vae_attention_block.2} parent=50 // loop_footer
                  %s269 = sadd.s32 1, %s265
                $region57: #{vae_attention_block.2} parent=50 // loop_footer_branch
                  %264 = sbr.rel target = $region53
                $region58: #{vae_attention_block.2} parent=50 // loop_exit
                  _
              $region51: #{vae_attention_block.2} parent=35 // pred_fallthru
                _
              // Predicated region
              $region59: #{vae_attention_block.2} parent=35 // pred_check
                _
              $region60: #{vae_attention_block.2} parent=35 // pred_check_branch
                %305 = sbr.rel target = $region62
              $region61: #{vae_attention_block.2} parent=35 // pred_region
                _
              $region62: #{vae_attention_block.2} parent=35 // pred_fallthru
                _
            $region36: #{vae_attention_block.2} parent=31 // pred_fallthru
              _
            // Predicated region
            $region37: #{vae_attention_block.2} parent=31 // pred_check
              _
            $region38: #{vae_attention_block.2} parent=31 // pred_check_branch
              %219 = sbr.rel target = $region40
            $region39: #{vae_attention_block.2} parent=31 // pred_region
              %s221 = ssub.s32 256, 1
              loop: start=0, step=1, limit=1
              $region41: #{vae_attention_block.2} parent=39 // loop_pre_header
                _
              $region42: #{vae_attention_block.2} parent=39 // loop_header
                %s223 = sphi 0, %s227
                %p224 = scmp.ge.s32.totalorder %s223, 1
                %s228 = sphi %s213, %s213
                %s229 = sphi %s209, %s209
              $region43: #{vae_attention_block.2} parent=39 // loop_header_branch
                %226 = sbr.rel (%p224) target = $region47
              $region44: #{vae_attention_block.2} parent=39 // loop_body
                %v230 = vld [vmem:[%s228] sm:%s221]
                %231 = vst [vmem:[%s229] sm:%s221] %v230
                %v232 = vld [vmem:[%s228 + $0x10] sm:%s221]
                %233 = vst [vmem:[%s229 + $0x8] sm:%s221] %v232
                %v234 = vld [vmem:[%s228 + $0x20] sm:%s221]
                %235 = vst [vmem:[%s229 + $0x10] sm:%s221] %v234
                %v236 = vld [vmem:[%s228 + $0x30] sm:%s221]
                %237 = vst [vmem:[%s229 + $0x18] sm:%s221] %v236
                %v238 = vld [vmem:[%s228 + $0x40] sm:%s221]
                %239 = vst [vmem:[%s229 + $0x20] sm:%s221] %v238
                %v240 = vld [vmem:[%s228 + $0x50] sm:%s221]
                %241 = vst [vmem:[%s229 + $0x28] sm:%s221] %v240
                %v242 = vld [vmem:[%s228 + $0x60] sm:%s221]
                %243 = vst [vmem:[%s229 + $0x30] sm:%s221] %v242
                %v244 = vld [vmem:[%s228 + $0x70] sm:%s221]
                %245 = vst [vmem:[%s229 + $0x38] sm:%s221] %v244
                %v246 = vld [vmem:[%s228 + $0x80] sm:%s221]
                %247 = vst [vmem:[%s229 + $0x40] sm:%s221] %v246
                %v248 = vld [vmem:[%s228 + $0x90] sm:%s221]
                %249 = vst [vmem:[%s229 + $0x48] sm:%s221] %v248
                %v250 = vld [vmem:[%s228 + $0xa0] sm:%s221]
                %251 = vst [vmem:[%s229 + $0x50] sm:%s221] %v250
                %v252 = vld [vmem:[%s228 + $0xb0] sm:%s221]
                %253 = vst [vmem:[%s229 + $0x58] sm:%s221] %v252
                %v254 = vld [vmem:[%s228 + $0xc0] sm:%s221]
                %255 = vst [vmem:[%s229 + $0x60] sm:%s221] %v254
                %v256 = vld [vmem:[%s228 + $0xd0] sm:%s221]
                %257 = vst [vmem:[%s229 + $0x68] sm:%s221] %v256
                %v258 = vld [vmem:[%s228 + $0xe0] sm:%s221]
                %259 = vst [vmem:[%s229 + $0x70] sm:%s221] %v258
                %v260 = vld [vmem:[%s228 + $0xf0] sm:%s221]
                %261 = vst [vmem:[%s229 + $0x78] sm:%s221] %v260
              $region45: #{vae_attention_block.2} parent=39 // loop_footer
                %s227 = sadd.s32 1, %s223
              $region46: #{vae_attention_block.2} parent=39 // loop_footer_branch
                %222 = sbr.rel target = $region42
              $region47: #{vae_attention_block.2} parent=39 // loop_exit
                _
            $region40: #{vae_attention_block.2} parent=31 // pred_fallthru
              _
          $region32: #{vae_attention_block.2} parent=27 // pred_fallthru
            _
          %306 = vnop
        $region28: #{vae_attention_block.2} parent=23 // pred_fallthru
          _
      $region24: #{vae_attention_block.2} parent=5 // pred_fallthru
        _
      %p307 = scmp.le.s32.totalorder 1, %s12
      %p308 = scmp.lt.s32.totalorder %s12, 5
      %p309 = pnand %p307, %p308
      %p310 = pneg %p309
      // Predicated region
      $region63: #{vae_attention_block.2} parent=5 // pred_check
        _
      $region64: #{vae_attention_block.2} parent=5 // pred_check_branch
        %312 = sbr.rel (%p309) target = $region66
      $region65: #{vae_attention_block.2} parent=5 // pred_region
        %s313 = ssub.s32 %s12, 1
        %s314 = sand.u32 %s39, 1
        %s315 = sand.u32 %s39, 1
        %s316 = smul.addr %s315, 128
        %s317 = scalar_lea.vmem [#allocation2], %s316
        // Predicated region
        $region67: #{vae_attention_block.2} parent=65 // pred_check
          %p318 = pneg %p52
        $region68: #{vae_attention_block.2} parent=65 // pred_check_branch
          %320 = sbr.rel (%p318) target = $region70
        $region69: #{vae_attention_block.2} parent=65 // pred_region
          _
        $region70: #{vae_attention_block.2} parent=65 // pred_fallthru
          _
        %s321 = sand.u32 %s39, 1
        %s322 = sand.u32 %s39, 1
        %s323 = smul.addr %s322, 128
        %s324 = scalar_lea.vmem [#allocation2], %s323
        %p325 = pneg %p52
        %p326 = pneg %p49
        %p327 = pneg %p73
        %p328 = pneg %p70
        %p329 = pneg %p94
        %p330 = pneg %p91
        %p331 = pneg %p122
        %p332 = pneg %p119
        %s333 = smul.u32 16, %s22
        %p334 = scmp.lt.s32.totalorder %s21, 1
        %s335 = scalar_select %p334, %s21, 1
        %p336 = scmp.lt.s32.totalorder %s333, 31
        %s337 = scalar_select %p336, %s333, 31
        %s338 = smul.addr %s335, 32
        %s339 = sadd.s32 %s337, %s338
        %s340 = smul.addr %s339, 4
        %s341 = scalar_lea.vmem %s3, %s340
        %p342 = pneg %p150
        %p343 = pneg %p147
        %s344 = smul.u32 16, %s22
        %p345 = scmp.lt.s32.totalorder %s21, 1
        %s346 = scalar_select %p345, %s21, 1
        %p347 = scmp.lt.s32.totalorder %s344, 31
        %s348 = scalar_select %p347, %s344, 31
        %s349 = smul.addr %s346, 32
        %s350 = sadd.s32 %s348, %s349
        %s351 = smul.addr %s350, 4
        %s352 = scalar_lea.vmem %s4, %s351
        %p353 = pneg %p178
        %p354 = pneg %p175
        %s355 = smul.u32 16, %s22
        %p356 = scmp.lt.s32.totalorder %s21, 1
        %s357 = scalar_select %p356, %s21, 1
        %p358 = scmp.lt.s32.totalorder %s355, 31
        %s359 = scalar_select %p358, %s355, 31
        %s360 = smul.addr %s357, 32
        %s361 = sadd.s32 %s359, %s360
        %s362 = smul.addr %s361, 4
        %s363 = scalar_lea.vmem %s5, %s362
        %s364 = smul.u32 16, %s22
        %p365 = scmp.lt.s32.totalorder %s21, 1
        %s366 = scalar_select %p365, %s21, 1
        %p367 = scmp.lt.s32.totalorder %s364, 31
        %s368 = scalar_select %p367, %s364, 31
        %s369 = smul.addr %s366, 32
        %s370 = sadd.s32 %s368, %s369
        %s371 = smul.addr %s370, 4
        %s372 = scalar_lea.vmem %s3, %s371
        %s373 = smul.u32 16, %s22
        %s374 = smul.u32 16, %s22
        %p375 = scmp.lt.s32.totalorder %s21, 1
        %s376 = scalar_select %p375, %s21, 1
        %p377 = scmp.lt.s32.totalorder %s374, 31
        %s378 = scalar_select %p377, %s374, 31
        %s379 = smul.addr %s376, 32
        %s380 = sadd.s32 %s378, %s379
        %s381 = smul.addr %s380, 4
        %s382 = scalar_lea.vmem %s4, %s381
        %s383 = smul.u32 16, %s22
        %s384 = smul.u32 16, %s22
        %p385 = scmp.lt.s32.totalorder %s21, 1
        %s386 = scalar_select %p385, %s21, 1
        %p387 = scmp.lt.s32.totalorder %s384, 31
        %s388 = scalar_select %p387, %s384, 31
        %s389 = smul.addr %s386, 32
        %s390 = sadd.s32 %s388, %s389
        %s391 = smul.addr %s390, 4
        %s392 = scalar_lea.vmem %s5, %s391
        %s393 = smul.u32 16, %s22
        %v394 = vld [vmem:[%s317] sm:$0xff]
        %v395 = vld [vmem:[%s317 + $0x8] sm:$0xff]
        %v396 = vld [vmem:[%s317 + $0x10] sm:$0xff]
        %v397 = vld [vmem:[%s317 + $0x18] sm:$0xff]
        %v398 = vld [vmem:[%s317 + $0x20] sm:$0xff]
        %v399 = vld [vmem:[%s317 + $0x28] sm:$0xff]
        %v400 = vld [vmem:[%s317 + $0x30] sm:$0xff]
        %v401 = vld [vmem:[%s317 + $0x38] sm:$0xff]
        %v402 = vld [vmem:[%s317 + $0x40] sm:$0xff]
        %v403 = vld [vmem:[%s317 + $0x48] sm:$0xff]
        %v404 = vld [vmem:[%s317 + $0x50] sm:$0xff]
        %v405 = vld [vmem:[%s317 + $0x58] sm:$0xff]
        %v406 = vld [vmem:[%s317 + $0x60] sm:$0xff]
        %v407 = vld [vmem:[%s317 + $0x68] sm:$0xff]
        %v408 = vld [vmem:[%s317 + $0x70] sm:$0xff]
        %v409 = vld [vmem:[%s317 + $0x78] sm:$0xff]
        %v410 = vpack.c.bf16 %v395, %v394
        %v411 = vpack.c.bf16 %v397, %v396
        %v412 = vpack.c.bf16 %v399, %v398
        %v413 = vpack.c.bf16 %v401, %v400
        %v414 = vpack.c.bf16 %v403, %v402
        %v415 = vpack.c.bf16 %v405, %v404
        %v416 = vpack.c.bf16 %v407, %v406
        %v417 = vpack.c.bf16 %v409, %v408
        %418 = vxpose.xlu0.c.b16.start [1/8] %v410, 128
        %419 = vxpose.xlu0.c.b16.cont [2/8] %v411, 128
        %420 = vxpose.xlu0.c.b16.cont [3/8] %v412, 128
        %421 = vxpose.xlu0.c.b16.cont [4/8] %v413, 128
        %422 = vxpose.xlu0.c.b16.cont [5/8] %v414, 128
        %423 = vxpose.xlu0.c.b16.cont [6/8] %v415, 128
        %424 = vxpose.xlu0.c.b16.cont [7/8] %v416, 128
        %425 = vxpose.xlu0.c.b16.end [8/8] %v417, 128
        %v426 = vpop.trf.xlu0
        %v427 = vpop.trf.xlu0
        %v428 = vpop.trf.xlu0
        %v429 = vpop.trf.xlu0
        %v430 = vpop.trf.xlu0
        %v431 = vpop.trf.xlu0
        %v432 = vpop.trf.xlu0
        %v433 = vpop.trf.xlu0
        %v434 = vld [vmem:[%s1] sm:$0xff]
        %v435 = vld [vmem:[%s1 + $0x8] sm:$0xf]
        %v436 = vld [vmem:[%s1 + $0xc] sm:$0xff]
        %v437 = vld [vmem:[%s1 + $0x14] sm:$0xf]
        %v438 = vld [vmem:[%s1 + $0x18] sm:$0xff]
        %v439 = vld [vmem:[%s1 + $0x20] sm:$0xf]
        %v440 = vld [vmem:[%s1 + $0x24] sm:$0xff]
        %v441 = vld [vmem:[%s1 + $0x2c] sm:$0xf]
        %v442 = vld [vmem:[%s1 + $0x30] sm:$0xff]
        %v443 = vld [vmem:[%s1 + $0x38] sm:$0xf]
        %v444 = vld [vmem:[%s1 + $0x3c] sm:$0xff]
        %v445 = vld [vmem:[%s1 + $0x44] sm:$0xf]
        %v446 = vld [vmem:[%s1 + $0x48] sm:$0xff]
        %v447 = vld [vmem:[%s1 + $0x50] sm:$0xf]
        %v448 = vld [vmem:[%s1 + $0x54] sm:$0xff]
        %v449 = vld [vmem:[%s1 + $0x5c] sm:$0xf]
        %v450 = vld [vmem:[%s1 + $0x60] sm:$0xff]
        %v451 = vld [vmem:[%s1 + $0x68] sm:$0xf]
        %v452 = vld [vmem:[%s1 + $0x6c] sm:$0xff]
        %v453 = vld [vmem:[%s1 + $0x74] sm:$0xf]
        %v454 = vld [vmem:[%s1 + $0x78] sm:$0xff]
        %v455 = vld [vmem:[%s1 + $0x80] sm:$0xf]
        %v456 = vld [vmem:[%s1 + $0x84] sm:$0xff]
        %v457 = vld [vmem:[%s1 + $0x8c] sm:$0xf]
        %v458 = vld [vmem:[%s1 + $0x90] sm:$0xff]
        %v459 = vld [vmem:[%s1 + $0x98] sm:$0xf]
        %v460 = vld [vmem:[%s1 + $0x9c] sm:$0xff]
        %v461 = vld [vmem:[%s1 + $0xa4] sm:$0xf]
        %v462 = vld [vmem:[%s1 + $0xa8] sm:$0xff]
        %v463 = vld [vmem:[%s1 + $0xb0] sm:$0xf]
        %v464 = vld [vmem:[%s1 + $0xb4] sm:$0xff]
        %v465 = vld [vmem:[%s1 + $0xbc] sm:$0xf]
        %v466 = vld [vmem:[%s2] sm:$0x7]
        %v468 = vperm.slane %v466, 0
        %v469 = vperm.slane %v466, 1
        %v470 = vperm.slane %v466, 2
        %v506 = vunpack.c.l.b16 %v434
        %v507 = vunpack.c.h.b16 %v434
        %v508 = vunpack.c.l.b16 %v435
        %v509 = vunpack.c.l.b16 %v436
        %v510 = vunpack.c.h.b16 %v436
        %v511 = vunpack.c.l.b16 %v437
        %v512 = vunpack.c.l.b16 %v438
        %v513 = vunpack.c.h.b16 %v438
        %v514 = vunpack.c.l.b16 %v439
        %v515 = vunpack.c.l.b16 %v440
        %v516 = vunpack.c.h.b16 %v440
        %v517 = vunpack.c.l.b16 %v441
        %v518 = vunpack.c.l.b16 %v442
        %v519 = vunpack.c.h.b16 %v442
        %v520 = vunpack.c.l.b16 %v443
        %v521 = vunpack.c.l.b16 %v444
        %v522 = vunpack.c.h.b16 %v444
        %v523 = vunpack.c.l.b16 %v445
        %v524 = vunpack.c.l.b16 %v446
        %v525 = vunpack.c.h.b16 %v446
        %v526 = vunpack.c.l.b16 %v447
        %v527 = vunpack.c.l.b16 %v448
        %v528 = vunpack.c.h.b16 %v448
        %v529 = vunpack.c.l.b16 %v449
        %v530 = vunpack.c.l.b16 %v450
        %v531 = vunpack.c.h.b16 %v450
        %v532 = vunpack.c.l.b16 %v451
        %v533 = vunpack.c.l.b16 %v452
        %v534 = vunpack.c.h.b16 %v452
        %v535 = vunpack.c.l.b16 %v453
        %v536 = vunpack.c.l.b16 %v454
        %v537 = vunpack.c.h.b16 %v454
        %v538 = vunpack.c.l.b16 %v455
        %v539 = vunpack.c.l.b16 %v456
        %v540 = vunpack.c.h.b16 %v456
        %v541 = vunpack.c.l.b16 %v457
        %v542 = vunpack.c.l.b16 %v458
        %v543 = vunpack.c.h.b16 %v458
        %v544 = vunpack.c.l.b16 %v459
        %v545 = vunpack.c.l.b16 %v460
        %v546 = vunpack.c.h.b16 %v460
        %v547 = vunpack.c.l.b16 %v461
        %v548 = vunpack.c.l.b16 %v462
        %v549 = vunpack.c.h.b16 %v462
        %v550 = vunpack.c.l.b16 %v463
        %v551 = vunpack.c.l.b16 %v464
        %v552 = vunpack.c.h.b16 %v464
        %v553 = vunpack.c.l.b16 %v465
        %v554 = vpack.c.b16 %v509, %v506
        %v555 = vpack.c.b16 %v510, %v507
        %v556 = vpack.c.b16 %v511, %v508
        %v557 = vpack.c.b16 %v515, %v512
        %v558 = vpack.c.b16 %v516, %v513
        %v559 = vpack.c.b16 %v517, %v514
        %v560 = vpack.c.b16 %v521, %v518
        %v561 = vpack.c.b16 %v522, %v519
        %v562 = vpack.c.b16 %v523, %v520
        %v563 = vpack.c.b16 %v527, %v524
        %v564 = vpack.c.b16 %v528, %v525
        %v565 = vpack.c.b16 %v529, %v526
        %v566 = vpack.c.b16 %v533, %v530
        %v567 = vpack.c.b16 %v534, %v531
        %v568 = vpack.c.b16 %v535, %v532
        %v569 = vpack.c.b16 %v539, %v536
        %v570 = vpack.c.b16 %v540, %v537
        %v571 = vpack.c.b16 %v541, %v538
        %v572 = vpack.c.b16 %v545, %v542
        %v573 = vpack.c.b16 %v546, %v543
        %v574 = vpack.c.b16 %v547, %v544
        %v575 = vpack.c.b16 %v551, %v548
        %v576 = vpack.c.b16 %v552, %v549
        %v577 = vpack.c.b16 %v553, %v550
        %602 = vmatpush.bf16.msra.mxu0 %v575
        %603 = vmatpush.bf16.msra.mxu0 %v572
        %604 = vmatpush.bf16.msra.mxu0 %v569
        %605 = vmatpush.bf16.msra.mxu0 %v566
        %606 = vmatpush.bf16.msra.mxu0 %v563
        %607 = vmatpush.bf16.msra.mxu0 %v560
        %608 = vmatpush.bf16.msra.mxu0 %v557
        %609 = vmatpush.bf16.msra.mxu0 %v554
        %610 = vmatmul.bf16.gmra.mxu0 %v426
        %v611 = vpop.f32.mrf.mxu0
        %v612 = vadd.f32 %v468, %v611
        %v613 = vpop.f32.mrf.mxu0
        %v614 = vadd.f32 %v468, %v613
        %615 = vmatmul.bf16.gmra.mxu0 %v427
        %v616 = vpop.f32.mrf.mxu0
        %v617 = vadd.f32 %v468, %v616
        %v618 = vpop.f32.mrf.mxu0
        %v619 = vadd.f32 %v468, %v618
        %620 = vmatmul.bf16.gmra.mxu0 %v428
        %v621 = vpop.f32.mrf.mxu0
        %v622 = vadd.f32 %v468, %v621
        %v623 = vpop.f32.mrf.mxu0
        %v624 = vadd.f32 %v468, %v623
        %625 = vmatmul.bf16.gmra.mxu0 %v429
        %v626 = vpop.f32.mrf.mxu0
        %v627 = vadd.f32 %v468, %v626
        %v628 = vpop.f32.mrf.mxu0
        %v629 = vadd.f32 %v468, %v628
        %630 = vmatmul.bf16.gmra.mxu0 %v430
        %v631 = vpop.f32.mrf.mxu0
        %v632 = vadd.f32 %v468, %v631
        %v633 = vpop.f32.mrf.mxu0
        %v634 = vadd.f32 %v468, %v633
        %635 = vmatmul.bf16.gmra.mxu0 %v431
        %v636 = vpop.f32.mrf.mxu0
        %v637 = vadd.f32 %v468, %v636
        %v638 = vpop.f32.mrf.mxu0
        %v639 = vadd.f32 %v468, %v638
        %640 = vmatmul.bf16.gmra.mxu0 %v432
        %v641 = vpop.f32.mrf.mxu0
        %v642 = vadd.f32 %v468, %v641
        %v643 = vpop.f32.mrf.mxu0
        %v644 = vadd.f32 %v468, %v643
        %645 = vmatmul.bf16.gmra.mxu0 %v433
        %v646 = vpop.f32.mrf.mxu0
        %v647 = vadd.f32 %v468, %v646
        %v648 = vpop.f32.mrf.mxu0
        %v649 = vadd.f32 %v468, %v648
        %650 = vdwg.mxu0
        %651 = vmatpush.bf16.msra.mxu0 %v576
        %652 = vmatpush.bf16.msra.mxu0 %v573
        %653 = vmatpush.bf16.msra.mxu0 %v570
        %654 = vmatpush.bf16.msra.mxu0 %v567
        %655 = vmatpush.bf16.msra.mxu0 %v564
        %656 = vmatpush.bf16.msra.mxu0 %v561
        %657 = vmatpush.bf16.msra.mxu0 %v558
        %658 = vmatpush.bf16.msra.mxu0 %v555
        %659 = vmatmul.bf16.gmra.mxu0 %v426
        %v660 = vpop.f32.mrf.mxu0
        %v661 = vadd.f32 %v469, %v660
        %v662 = vpop.f32.mrf.mxu0
        %v663 = vadd.f32 %v469, %v662
        %664 = vmatmul.bf16.gmra.mxu0 %v427
        %v665 = vpop.f32.mrf.mxu0
        %v666 = vadd.f32 %v469, %v665
        %v667 = vpop.f32.mrf.mxu0
        %v668 = vadd.f32 %v469, %v667
        %669 = vmatmul.bf16.gmra.mxu0 %v428
        %v670 = vpop.f32.mrf.mxu0
        %v671 = vadd.f32 %v469, %v670
        %v672 = vpop.f32.mrf.mxu0
        %v673 = vadd.f32 %v469, %v672
        %674 = vmatmul.bf16.gmra.mxu0 %v429
        %v675 = vpop.f32.mrf.mxu0
        %v676 = vadd.f32 %v469, %v675
        %v677 = vpop.f32.mrf.mxu0
        %v678 = vadd.f32 %v469, %v677
        %679 = vmatmul.bf16.gmra.mxu0 %v430
        %v680 = vpop.f32.mrf.mxu0
        %v681 = vadd.f32 %v469, %v680
        %v682 = vpop.f32.mrf.mxu0
        %v683 = vadd.f32 %v469, %v682
        %684 = vmatmul.bf16.gmra.mxu0 %v431
        %v685 = vpop.f32.mrf.mxu0
        %v686 = vadd.f32 %v469, %v685
        %v687 = vpop.f32.mrf.mxu0
        %v688 = vadd.f32 %v469, %v687
        %689 = vmatmul.bf16.gmra.mxu0 %v432
        %v690 = vpop.f32.mrf.mxu0
        %v691 = vadd.f32 %v469, %v690
        %v692 = vpop.f32.mrf.mxu0
        %v693 = vadd.f32 %v469, %v692
        %694 = vmatmul.bf16.gmra.mxu0 %v433
        %v695 = vpop.f32.mrf.mxu0
        %v696 = vadd.f32 %v469, %v695
        %v697 = vpop.f32.mrf.mxu0
        %v698 = vadd.f32 %v469, %v697
        %699 = vdwg.mxu0
        %700 = vmatpush.bf16.msra.mxu0 %v577
        %701 = vmatpush.bf16.msra.mxu0 %v574
        %702 = vmatpush.bf16.msra.mxu0 %v571
        %703 = vmatpush.bf16.msra.mxu0 %v568
        %704 = vmatpush.bf16.msra.mxu0 %v565
        %705 = vmatpush.bf16.msra.mxu0 %v562
        %706 = vmatpush.bf16.msra.mxu0 %v559
        %707 = vmatpush.bf16.msra.mxu0 %v556
        %708 = vmatmul.bf16.gmra.mxu0 %v426
        %v709 = vpop.f32.mrf.mxu0
        %v710 = vadd.f32 %v470, %v709
        %v711 = vpop.f32.mrf.mxu0
        %v712 = vadd.f32 %v470, %v711
        %713 = vmatmul.bf16.gmra.mxu0 %v427
        %v714 = vpop.f32.mrf.mxu0
        %v715 = vadd.f32 %v470, %v714
        %v716 = vpop.f32.mrf.mxu0
        %v717 = vadd.f32 %v470, %v716
        %718 = vmatmul.bf16.gmra.mxu0 %v428
        %v719 = vpop.f32.mrf.mxu0
        %v720 = vadd.f32 %v470, %v719
        %v721 = vpop.f32.mrf.mxu0
        %v722 = vadd.f32 %v470, %v721
        %723 = vmatmul.bf16.gmra.mxu0 %v429
        %v724 = vpop.f32.mrf.mxu0
        %v725 = vadd.f32 %v470, %v724
        %v726 = vpop.f32.mrf.mxu0
        %v727 = vadd.f32 %v470, %v726
        %728 = vmatmul.bf16.gmra.mxu0 %v430
        %v729 = vpop.f32.mrf.mxu0
        %v730 = vadd.f32 %v470, %v729
        %v731 = vpop.f32.mrf.mxu0
        %v732 = vadd.f32 %v470, %v731
        %733 = vmatmul.bf16.gmra.mxu0 %v431
        %v734 = vpop.f32.mrf.mxu0
        %v735 = vadd.f32 %v470, %v734
        %v736 = vpop.f32.mrf.mxu0
        %v737 = vadd.f32 %v470, %v736
        %738 = vmatmul.bf16.gmra.mxu0 %v432
        %v739 = vpop.f32.mrf.mxu0
        %v740 = vadd.f32 %v470, %v739
        %v741 = vpop.f32.mrf.mxu0
        %v742 = vadd.f32 %v470, %v741
        %743 = vmatmul.bf16.gmra.mxu0 %v433
        %v744 = vpop.f32.mrf.mxu0
        %v745 = vadd.f32 %v470, %v744
        %v746 = vpop.f32.mrf.mxu0
        %v747 = vadd.f32 %v470, %v746
        %748 = vdwg.mxu0
        %v749 = vpack.c.bf16 %v612, %v612
        %v750 = vpack.c.bf16 %v614, %v614
        %v751 = vpack.c.bf16 %v617, %v617
        %v752 = vpack.c.bf16 %v619, %v619
        %v753 = vpack.c.bf16 %v622, %v622
        %v754 = vpack.c.bf16 %v624, %v624
        %v755 = vpack.c.bf16 %v627, %v627
        %v756 = vpack.c.bf16 %v629, %v629
        %v757 = vpack.c.bf16 %v632, %v632
        %v758 = vpack.c.bf16 %v634, %v634
        %v759 = vpack.c.bf16 %v637, %v637
        %v760 = vpack.c.bf16 %v639, %v639
        %v761 = vpack.c.bf16 %v642, %v642
        %v762 = vpack.c.bf16 %v644, %v644
        %v763 = vpack.c.bf16 %v647, %v647
        %v764 = vpack.c.bf16 %v649, %v649
        %765 = vst [vmem:[%s372] sm:$0xf] %v749
        %766 = vst [vmem:[%s372 + $0x4] sm:$0xf] %v750
        %767 = vst [vmem:[%s372 + $0x8] sm:$0xf] %v751
        %768 = vst [vmem:[%s372 + $0xc] sm:$0xf] %v752
        %769 = vst [vmem:[%s372 + $0x10] sm:$0xf] %v753
        %770 = vst [vmem:[%s372 + $0x14] sm:$0xf] %v754
        %771 = vst [vmem:[%s372 + $0x18] sm:$0xf] %v755
        %772 = vst [vmem:[%s372 + $0x1c] sm:$0xf] %v756
        %773 = vst [vmem:[%s372 + $0x20] sm:$0xf] %v757
        %774 = vst [vmem:[%s372 + $0x24] sm:$0xf] %v758
        %775 = vst [vmem:[%s372 + $0x28] sm:$0xf] %v759
        %776 = vst [vmem:[%s372 + $0x2c] sm:$0xf] %v760
        %777 = vst [vmem:[%s372 + $0x30] sm:$0xf] %v761
        %778 = vst [vmem:[%s372 + $0x34] sm:$0xf] %v762
        %779 = vst [vmem:[%s372 + $0x38] sm:$0xf] %v763
        %780 = vst [vmem:[%s372 + $0x3c] sm:$0xf] %v764
        %v781 = vpack.c.bf16 %v661, %v661
        %v782 = vpack.c.bf16 %v663, %v663
        %v783 = vpack.c.bf16 %v666, %v666
        %v784 = vpack.c.bf16 %v668, %v668
        %v785 = vpack.c.bf16 %v671, %v671
        %v786 = vpack.c.bf16 %v673, %v673
        %v787 = vpack.c.bf16 %v676, %v676
        %v788 = vpack.c.bf16 %v678, %v678
        %v789 = vpack.c.bf16 %v681, %v681
        %v790 = vpack.c.bf16 %v683, %v683
        %v791 = vpack.c.bf16 %v686, %v686
        %v792 = vpack.c.bf16 %v688, %v688
        %v793 = vpack.c.bf16 %v691, %v691
        %v794 = vpack.c.bf16 %v693, %v693
        %v795 = vpack.c.bf16 %v696, %v696
        %v796 = vpack.c.bf16 %v698, %v698
        %797 = vst [vmem:[%s382] sm:$0xf] %v781
        %798 = vst [vmem:[%s382 + $0x4] sm:$0xf] %v782
        %799 = vst [vmem:[%s382 + $0x8] sm:$0xf] %v783
        %800 = vst [vmem:[%s382 + $0xc] sm:$0xf] %v784
        %801 = vst [vmem:[%s382 + $0x10] sm:$0xf] %v785
        %802 = vst [vmem:[%s382 + $0x14] sm:$0xf] %v786
        %803 = vst [vmem:[%s382 + $0x18] sm:$0xf] %v787
        %804 = vst [vmem:[%s382 + $0x1c] sm:$0xf] %v788
        %805 = vst [vmem:[%s382 + $0x20] sm:$0xf] %v789
        %806 = vst [vmem:[%s382 + $0x24] sm:$0xf] %v790
        %807 = vst [vmem:[%s382 + $0x28] sm:$0xf] %v791
        %808 = vst [vmem:[%s382 + $0x2c] sm:$0xf] %v792
        %809 = vst [vmem:[%s382 + $0x30] sm:$0xf] %v793
        %810 = vst [vmem:[%s382 + $0x34] sm:$0xf] %v794
        %811 = vst [vmem:[%s382 + $0x38] sm:$0xf] %v795
        %812 = vst [vmem:[%s382 + $0x3c] sm:$0xf] %v796
        %v813 = vpack.c.bf16 %v710, %v710
        %v814 = vpack.c.bf16 %v712, %v712
        %v815 = vpack.c.bf16 %v715, %v715
        %v816 = vpack.c.bf16 %v717, %v717
        %v817 = vpack.c.bf16 %v720, %v720
        %v818 = vpack.c.bf16 %v722, %v722
        %v819 = vpack.c.bf16 %v725, %v725
        %v820 = vpack.c.bf16 %v727, %v727
        %v821 = vpack.c.bf16 %v730, %v730
        %v822 = vpack.c.bf16 %v732, %v732
        %v823 = vpack.c.bf16 %v735, %v735
        %v824 = vpack.c.bf16 %v737, %v737
        %v825 = vpack.c.bf16 %v740, %v740
        %v826 = vpack.c.bf16 %v742, %v742
        %v827 = vpack.c.bf16 %v745, %v745
        %v828 = vpack.c.bf16 %v747, %v747
        %829 = vst [vmem:[%s392] sm:$0xf] %v813
        %830 = vst [vmem:[%s392 + $0x4] sm:$0xf] %v814
        %831 = vst [vmem:[%s392 + $0x8] sm:$0xf] %v815
        %832 = vst [vmem:[%s392 + $0xc] sm:$0xf] %v816
        %833 = vst [vmem:[%s392 + $0x10] sm:$0xf] %v817
        %834 = vst [vmem:[%s392 + $0x14] sm:$0xf] %v818
        %835 = vst [vmem:[%s392 + $0x18] sm:$0xf] %v819
        %836 = vst [vmem:[%s392 + $0x1c] sm:$0xf] %v820
        %837 = vst [vmem:[%s392 + $0x20] sm:$0xf] %v821
        %838 = vst [vmem:[%s392 + $0x24] sm:$0xf] %v822
        %839 = vst [vmem:[%s392 + $0x28] sm:$0xf] %v823
        %840 = vst [vmem:[%s392 + $0x2c] sm:$0xf] %v824
        %841 = vst [vmem:[%s392 + $0x30] sm:$0xf] %v825
        %842 = vst [vmem:[%s392 + $0x34] sm:$0xf] %v826
        %843 = vst [vmem:[%s392 + $0x38] sm:$0xf] %v827
        %844 = vst [vmem:[%s392 + $0x3c] sm:$0xf] %v828
        %s845 = smul.u32 16, %s22
        %p846 = scmp.lt.s32.totalorder %s21, 1
        %s847 = scalar_select %p846, %s21, 1
        %p848 = scmp.lt.s32.totalorder %s845, 31
        %s849 = scalar_select %p848, %s845, 31
        %s850 = smul.addr %s847, 32
        %s851 = sadd.s32 %s849, %s850
        %s852 = smul.addr %s851, 4
        %s853 = scalar_lea.vmem %s3, %s852
        %s854 = smul.u32 16, %s22
        %p855 = scmp.lt.s32.totalorder %s21, 1
        %s856 = scalar_select %p855, %s21, 1
        %p857 = scmp.lt.s32.totalorder %s854, 31
        %s858 = scalar_select %p857, %s854, 31
        %s859 = smul.addr %s856, 32
        %s860 = sadd.s32 %s858, %s859
        %s861 = smul.addr %s860, 4
        %s862 = scalar_lea.vmem %s4, %s861
        %s863 = smul.u32 16, %s22
        %p864 = scmp.lt.s32.totalorder %s21, 1
        %s865 = scalar_select %p864, %s21, 1
        %p866 = scmp.lt.s32.totalorder %s863, 31
        %s867 = scalar_select %p866, %s863, 31
        %s868 = smul.addr %s865, 32
        %s869 = sadd.s32 %s867, %s868
        %s870 = smul.addr %s869, 4
        %s871 = scalar_lea.vmem %s5, %s870
        // Predicated region
        $region71: #{vae_attention_block.2} parent=65 // pred_check
          %p872 = pneg %p119
        $region72: #{vae_attention_block.2} parent=65 // pred_check_branch
          %874 = sbr.rel (%p872) target = $region74
        $region73: #{vae_attention_block.2} parent=65 // pred_region
          %s875 = smul.u32 16, %s22
        $region74: #{vae_attention_block.2} parent=65 // pred_fallthru
          _
        // Predicated region
        $region75: #{vae_attention_block.2} parent=65 // pred_check
          %p876 = pneg %p147
        $region76: #{vae_attention_block.2} parent=65 // pred_check_branch
          %878 = sbr.rel (%p876) target = $region78
        $region77: #{vae_attention_block.2} parent=65 // pred_region
          %s879 = smul.u32 16, %s22
        $region78: #{vae_attention_block.2} parent=65 // pred_fallthru
          _
        // Predicated region
        $region79: #{vae_attention_block.2} parent=65 // pred_check
          %p880 = pneg %p175
        $region80: #{vae_attention_block.2} parent=65 // pred_check_branch
          %882 = sbr.rel (%p880) target = $region82
        $region81: #{vae_attention_block.2} parent=65 // pred_region
          %s883 = smul.u32 16, %s22
        $region82: #{vae_attention_block.2} parent=65 // pred_fallthru
          _
      $region66: #{vae_attention_block.2} parent=5 // pred_fallthru
        _
      %p884 = scmp.le.s32.totalorder 2, %s12
      // Predicated region
      $region83: #{vae_attention_block.2} parent=5 // pred_check
        %p885 = pneg %p884
      $region84: #{vae_attention_block.2} parent=5 // pred_check_branch
        %887 = sbr.rel (%p885) target = $region86
      $region85: #{vae_attention_block.2} parent=5 // pred_region
        %s888 = ssub.s32 %s12, 2
        // Predicated region
        $region87: #{vae_attention_block.2} parent=85 // pred_check
          %p889 = pneg %p125
        $region88: #{vae_attention_block.2} parent=85 // pred_check_branch
          %891 = sbr.rel (%p889) target = $region90
        $region89: #{vae_attention_block.2} parent=85 // pred_region
          %s892 = smul.u32 16, %s24
          %p893 = scmp.lt.s32.totalorder %s23, 1
          %s894 = scalar_select %p893, %s23, 1
          %p895 = scmp.lt.s32.totalorder %s892, 31
          %s896 = scalar_select %p895, %s892, 31
          %s897 = smul.addr %s894, 32
          %s898 = sadd.s32 %s896, %s897
          %s899 = smul.addr %s898, 4
          %s900 = scalar_lea.vmem %s3, %s899
        $region90: #{vae_attention_block.2} parent=85 // pred_fallthru
          _
        // Predicated region
        $region91: #{vae_attention_block.2} parent=85 // pred_check
          %p901 = pneg %p153
        $region92: #{vae_attention_block.2} parent=85 // pred_check_branch
          %903 = sbr.rel (%p901) target = $region94
        $region93: #{vae_attention_block.2} parent=85 // pred_region
          %s904 = smul.u32 16, %s24
          %p905 = scmp.lt.s32.totalorder %s23, 1
          %s906 = scalar_select %p905, %s23, 1
          %p907 = scmp.lt.s32.totalorder %s904, 31
          %s908 = scalar_select %p907, %s904, 31
          %s909 = smul.addr %s906, 32
          %s910 = sadd.s32 %s908, %s909
          %s911 = smul.addr %s910, 4
          %s912 = scalar_lea.vmem %s4, %s911
        $region94: #{vae_attention_block.2} parent=85 // pred_fallthru
          _
        // Predicated region
        $region95: #{vae_attention_block.2} parent=85 // pred_check
          %p913 = pneg %p181
        $region96: #{vae_attention_block.2} parent=85 // pred_check_branch
          %915 = sbr.rel (%p913) target = $region98
        $region97: #{vae_attention_block.2} parent=85 // pred_region
          %s916 = smul.u32 16, %s24
          %p917 = scmp.lt.s32.totalorder %s23, 1
          %s918 = scalar_select %p917, %s23, 1
          %p919 = scmp.lt.s32.totalorder %s916, 31
          %s920 = scalar_select %p919, %s916, 31
          %s921 = smul.addr %s918, 32
          %s922 = sadd.s32 %s920, %s921
          %s923 = smul.addr %s922, 4
          %s924 = scalar_lea.vmem %s5, %s923
        $region98: #{vae_attention_block.2} parent=85 // pred_fallthru
          _
      $region86: #{vae_attention_block.2} parent=5 // pred_fallthru
        _
    $region6: #{vae_attention_block.2} parent=1 // loop_footer
      %s16 = sadd.s32 1, %s12
    $region7: #{vae_attention_block.2} parent=1 // loop_footer_branch
      %11 = sbr.rel target = $region3
    $region8: #{vae_attention_block.2} parent=1 // loop_exit
      _

// kernel: vae_attention_block.3
$region0: #{vae_attention_block.3}
  #allocation0 [shape = 'u32[]', space=smem, size = 0x4, offset = 0x4, fixed_abs, tag = 'smem constant byte address 0x4 - core index']
  #allocation1 [shape = 'u32[72,128]{1,0:T(1,128)}', space=vmem, size = 0x9000, scoped, tag = 'internal scratch']
  %s0 = inlined_call_operand.vmem [shape: bf16[2,256,128], index: 0, kind: input, shape index: {}]
  %s1 = inlined_call_operand.vmem [shape: bf16[2,256,128], index: 1, kind: input, shape index: {}]
  %s2 = inlined_call_operand.vmem [shape: bf16[2,256,128], index: 2, kind: input, shape index: {}]
  %s3 = inlined_call_operand.vmem [shape: f32[2,128,256], index: 3, kind: input, shape index: {}]
  %s4 = inlined_call_operand.vmem [shape: bf16[128,128], index: 4, kind: input, shape index: {}]
  %s5 = inlined_call_operand.vmem [shape: f32[128,1], index: 5, kind: input, shape index: {}]
  %s6 = inlined_call_operand.vmem [shape: f32[2,128,256], index: 6, kind: output, shape index: {}]
  %s7 = sld [smem:[#allocation0]]
  $region129: #{vae_attention_block.3} parent=0
    _
  %s9 = ssub.s32 1, %s7
  %s10 = scalar_select 0, %s9, %s7
  $region1: #{vae_attention_block.3} parent=0
    #allocation2 [shape = 'u8[131072]{0}', space=vmem, size = 0x20000, scoped, tag = 'input window, operand 3']
    #allocation3 [shape = 'u8[131072]{0}', space=vmem, size = 0x20000, scoped, tag = 'output window, operand 0']
    loop: start=0, step=1, limit=6
    $region2: #{vae_attention_block.3} parent=1 // loop_pre_header
      _
    $region3: #{vae_attention_block.3} parent=1 // loop_header
      %s12 = sphi 0, %s16
      %p13 = scmp.ge.s32.totalorder %s12, 6
      %s19 = sphi 0, %s31
      %s20 = sphi 0, %s27
      %s21 = sphi 0, %s19
      %s22 = sphi 0, %s20
      %s23 = sphi 0, %s21
      %s24 = sphi 0, %s22
      %s36 = sphi 0, %s38
      %s39 = sphi 0, %s36
      %s40 = sphi 0, %s39
      %s56 = sphi 0, %s40
      %s62 = sphi 0, %s64
      %s65 = sphi 0, %s62
      %s66 = sphi 0, %s65
      %s82 = sphi 0, %s66
      %s88 = sphi 0, %s90
      %s91 = sphi 0, %s88
      %s92 = sphi 0, %s91
      %s108 = sphi 0, %s92
      %s116 = sphi 0, %s118
      %s119 = sphi 0, %s116
      %s120 = sphi 0, %s119
      %s136 = sphi 0, %s120
      %s140 = sphi 0, %s140
      %s142 = sphi 0, %s140
      %s143 = sphi 0, %s142
      %s157 = sphi 0, %s143
      %s161 = sphi 0, %s161
      %s163 = sphi 0, %s161
      %s164 = sphi 0, %s163
      %s178 = sphi 0, %s164
      %s186 = sphi 0, %s188
      %s189 = sphi 0, %s186
      %s190 = sphi 0, %s189
      %s206 = sphi 0, %s190
    $region4: #{vae_attention_block.3} parent=1 // loop_header_branch
      %15 = sbr.rel (%p13) target = $region8
    $region5: #{vae_attention_block.3} parent=1 // loop_body
      %s17 = ssub.s32 %s12, 1
      %s18 = ssub.s32 %s12, 2
      %s25 = sadd.s32 1, %s20
      %p26 = scmp.ge.s32.totalorder %s25, 2
      %s27 = scalar_select %p26, 0, %s25
      %s28 = sadd.s32 1, %s19
      %s29 = scalar_select %p26, %s28, %s19
      %p30 = scmp.ge.s32.totalorder %s29, 2
      %s31 = scalar_select %p30, 0, %s29
      %s32 = ssub.s32 %s19, %s31
      %s33 = ssub.s32 %s20, %s27
      %s34 = sor.u32 %s32, %s33
      %p35 = scmp.eq.s32.totalorder %s34, 0
      %s37 = sadd.s32 %s36, 1
      %s38 = scalar_select %p35, %s36, %s37
      %p41 = pneg %p35
      %p42 = scmp.eq.s32.totalorder %s12, 3
      %p43 = por %p41, %p42
      %p44 = scmp.ne.s32.totalorder %s36, %s39
      %p45 = scmp.eq.s32.totalorder %s12, 0
      %p46 = por %p44, %p45
      %p47 = scmp.ne.s32.totalorder %s36, %s39
      %p48 = scmp.eq.s32.totalorder %s17, 3
      %p49 = por %p47, %p48
      %p50 = scmp.ne.s32.totalorder %s39, %s40
      %p51 = scmp.eq.s32.totalorder %s17, 0
      %p52 = por %p50, %p51
      %p53 = scmp.ne.s32.totalorder %s39, %s40
      %p54 = scmp.eq.s32.totalorder %s18, 3
      %p55 = por %p53, %p54
      %p57 = scmp.ne.s32.totalorder %s40, %s56
      %p58 = scmp.eq.s32.totalorder %s18, 0
      %p59 = por %p57, %p58
      %s60 = ssub.s32 %s19, %s31
      %p61 = scmp.eq.s32.totalorder %s60, 0
      %s63 = sadd.s32 %s62, 1
      %s64 = scalar_select %p61, %s62, %s63
      %p67 = pneg %p61
      %p68 = scmp.eq.s32.totalorder %s12, 3
      %p69 = por %p67, %p68
      %p70 = scmp.ne.s32.totalorder %s62, %s65
      %p71 = scmp.eq.s32.totalorder %s12, 0
      %p72 = por %p70, %p71
      %p73 = scmp.ne.s32.totalorder %s62, %s65
      %p74 = scmp.eq.s32.totalorder %s17, 3
      %p75 = por %p73, %p74
      %p76 = scmp.ne.s32.totalorder %s65, %s66
      %p77 = scmp.eq.s32.totalorder %s17, 0
      %p78 = por %p76, %p77
      %p79 = scmp.ne.s32.totalorder %s65, %s66
      %p80 = scmp.eq.s32.totalorder %s18, 3
      %p81 = por %p79, %p80
      %p83 = scmp.ne.s32.totalorder %s66, %s82
      %p84 = scmp.eq.s32.totalorder %s18, 0
      %p85 = por %p83, %p84
      %s86 = ssub.s32 %s19, %s31
      %p87 = scmp.eq.s32.totalorder %s86, 0
      %s89 = sadd.s32 %s88, 1
      %s90 = scalar_select %p87, %s88, %s89
      %p93 = pneg %p87
      %p94 = scmp.eq.s32.totalorder %s12, 3
      %p95 = por %p93, %p94
      %p96 = scmp.ne.s32.totalorder %s88, %s91
      %p97 = scmp.eq.s32.totalorder %s12, 0
      %p98 = por %p96, %p97
      %p99 = scmp.ne.s32.totalorder %s88, %s91
      %p100 = scmp.eq.s32.totalorder %s17, 3
      %p101 = por %p99, %p100
      %p102 = scmp.ne.s32.totalorder %s91, %s92
      %p103 = scmp.eq.s32.totalorder %s17, 0
      %p104 = por %p102, %p103
      %p105 = scmp.ne.s32.totalorder %s91, %s92
      %p106 = scmp.eq.s32.totalorder %s18, 3
      %p107 = por %p105, %p106
      %p109 = scmp.ne.s32.totalorder %s92, %s108
      %p110 = scmp.eq.s32.totalorder %s18, 0
      %p111 = por %p109, %p110
      %s112 = ssub.s32 %s19, %s31
      %s113 = ssub.s32 %s20, %s27
      %s114 = sor.u32 %s112, %s113
      %p115 = scmp.eq.s32.totalorder %s114, 0
      %s117 = sadd.s32 %s116, 1
      %s118 = scalar_select %p115, %s116, %s117
      %p121 = pneg %p115
      %p122 = scmp.eq.s32.totalorder %s12, 3
      %p123 = por %p121, %p122
      %p124 = scmp.ne.s32.totalorder %s116, %s119
      %p125 = scmp.eq.s32.totalorder %s12, 0
      %p126 = por %p124, %p125
      %p127 = scmp.ne.s32.totalorder %s116, %s119
      %p128 = scmp.eq.s32.totalorder %s17, 3
      %p129 = por %p127, %p128
      %p130 = scmp.ne.s32.totalorder %s119, %s120
      %p131 = scmp.eq.s32.totalorder %s17, 0
      %p132 = por %p130, %p131
      %p133 = scmp.ne.s32.totalorder %s119, %s120
      %p134 = scmp.eq.s32.totalorder %s18, 3
      %p135 = por %p133, %p134
      %p137 = scmp.ne.s32.totalorder %s120, %s136
      %p138 = scmp.eq.s32.totalorder %s18, 0
      %p139 = por %p137, %p138
      %s141 = sadd.s32 %s140, 1
      %p144 = scmp.eq.s32.totalorder %s12, 3
      %p145 = scmp.ne.s32.totalorder %s140, %s142
      %p146 = scmp.eq.s32.totalorder %s12, 0
      %p147 = por %p145, %p146
      %p148 = scmp.ne.s32.totalorder %s140, %s142
      %p149 = scmp.eq.s32.totalorder %s17, 3
      %p150 = por %p148, %p149
      %p151 = scmp.ne.s32.totalorder %s142, %s143
      %p152 = scmp.eq.s32.totalorder %s17, 0
      %p153 = por %p151, %p152
      %p154 = scmp.ne.s32.totalorder %s142, %s143
      %p155 = scmp.eq.s32.totalorder %s18, 3
      %p156 = por %p154, %p155
      %p158 = scmp.ne.s32.totalorder %s143, %s157
      %p159 = scmp.eq.s32.totalorder %s18, 0
      %p160 = por %p158, %p159
      %s162 = sadd.s32 %s161, 1
      %p165 = scmp.eq.s32.totalorder %s12, 3
      %p166 = scmp.ne.s32.totalorder %s161, %s163
      %p167 = scmp.eq.s32.totalorder %s12, 0
      %p168 = por %p166, %p167
      %p169 = scmp.ne.s32.totalorder %s161, %s163
      %p170 = scmp.eq.s32.totalorder %s17, 3
      %p171 = por %p169, %p170
      %p172 = scmp.ne.s32.totalorder %s163, %s164
      %p173 = scmp.eq.s32.totalorder %s17, 0
      %p174 = por %p172, %p173
      %p175 = scmp.ne.s32.totalorder %s163, %s164
      %p176 = scmp.eq.s32.totalorder %s18, 3
      %p177 = por %p175, %p176
      %p179 = scmp.ne.s32.totalorder %s164, %s178
      %p180 = scmp.eq.s32.totalorder %s18, 0
      %p181 = por %p179, %p180
      %s182 = ssub.s32 %s19, %s31
      %s183 = ssub.s32 %s20, %s27
      %s184 = sor.u32 %s182, %s183
      %p185 = scmp.eq.s32.totalorder %s184, 0
      %s187 = sadd.s32 %s186, 1
      %s188 = scalar_select %p185, %s186, %s187
      %p191 = pneg %p185
      %p192 = scmp.eq.s32.totalorder %s12, 3
      %p193 = por %p191, %p192
      %p194 = scmp.ne.s32.totalorder %s186, %s189
      %p195 = scmp.eq.s32.totalorder %s12, 0
      %p196 = por %p194, %p195
      %p197 = scmp.ne.s32.totalorder %s186, %s189
      %p198 = scmp.eq.s32.totalorder %s17, 3
      %p199 = por %p197, %p198
      %p200 = scmp.ne.s32.totalorder %s189, %s190
      %p201 = scmp.eq.s32.totalorder %s17, 0
      %p202 = por %p200, %p201
      %p203 = scmp.ne.s32.totalorder %s189, %s190
      %p204 = scmp.eq.s32.totalorder %s18, 3
      %p205 = por %p203, %p204
      %p207 = scmp.ne.s32.totalorder %s190, %s206
      %p208 = scmp.eq.s32.totalorder %s18, 0
      %p209 = por %p207, %p208
      %p210 = scmp.le.s32.totalorder 1, %s12
      %p211 = scmp.lt.s32.totalorder %s12, 5
      %p212 = pnand %p210, %p211
      %p213 = pneg %p212
      // Predicated region
      $region9: #{vae_attention_block.3} parent=5 // pred_check
        _
      $region10: #{vae_attention_block.3} parent=5 // pred_check_branch
        %215 = sbr.rel (%p212) target = $region12
      $region11: #{vae_attention_block.3} parent=5 // pred_region
        %s216 = ssub.s32 %s12, 1
        // Predicated region
        $region13: #{vae_attention_block.3} parent=11 // pred_check
          %p217 = pneg %p153
        $region14: #{vae_attention_block.3} parent=11 // pred_check_branch
          %219 = sbr.rel (%p217) target = $region16
        $region15: #{vae_attention_block.3} parent=11 // pred_region
          _
        $region16: #{vae_attention_block.3} parent=11 // pred_fallthru
          _
        // Predicated region
        $region17: #{vae_attention_block.3} parent=11 // pred_check
          %p220 = pneg %p174
        $region18: #{vae_attention_block.3} parent=11 // pred_check_branch
          %222 = sbr.rel (%p220) target = $region20
        $region19: #{vae_attention_block.3} parent=11 // pred_region
          _
        $region20: #{vae_attention_block.3} parent=11 // pred_fallthru
          _
      $region12: #{vae_attention_block.3} parent=5 // pred_fallthru
        _
      %p223 = scmp.lt.s32.totalorder %s12, 4
      // Predicated region
      $region21: #{vae_attention_block.3} parent=5 // pred_check
        %p224 = pneg %p223
      $region22: #{vae_attention_block.3} parent=5 // pred_check_branch
        %226 = sbr.rel (%p224) target = $region24
      $region23: #{vae_attention_block.3} parent=5 // pred_region
        // Predicated region
        $region25: #{vae_attention_block.3} parent=23 // pred_check
          %p227 = pneg %p46
        $region26: #{vae_attention_block.3} parent=23 // pred_check_branch
          %229 = sbr.rel (%p227) target = $region28
        $region27: #{vae_attention_block.3} parent=23 // pred_region
          %s230 = smul.u32 16, %s20
          %p231 = scmp.lt.s32.totalorder %s19, 1
          %s232 = scalar_select %p231, %s19, 1
          %p233 = scmp.lt.s32.totalorder %s230, 31
          %s234 = scalar_select %p233, %s230, 31
          %s235 = smul.addr %s232, 32
          %s236 = sadd.s32 %s234, %s235
          %s237 = smul.addr %s236, 4
          %s238 = scalar_lea.vmem %s0, %s237
          %s239 = smul.u32 16, %s20
        $region28: #{vae_attention_block.3} parent=23 // pred_fallthru
          _
        // Predicated region
        $region29: #{vae_attention_block.3} parent=23 // pred_check
          %p240 = pneg %p72
        $region30: #{vae_attention_block.3} parent=23 // pred_check_branch
          %242 = sbr.rel (%p240) target = $region32
        $region31: #{vae_attention_block.3} parent=23 // pred_region
          %p243 = scmp.lt.s32.totalorder %s19, 1
          %s244 = scalar_select %p243, %s19, 1
          %s245 = smul.addr %s244, 32
          %s246 = smul.addr %s245, 4
          %s247 = scalar_lea.vmem %s1, %s246
        $region32: #{vae_attention_block.3} parent=23 // pred_fallthru
          _
        // Predicated region
        $region33: #{vae_attention_block.3} parent=23 // pred_check
          %p248 = pneg %p98
        $region34: #{vae_attention_block.3} parent=23 // pred_check_branch
          %250 = sbr.rel (%p248) target = $region36
        $region35: #{vae_attention_block.3} parent=23 // pred_region
          %p251 = scmp.lt.s32.totalorder %s19, 1
          %s252 = scalar_select %p251, %s19, 1
          %s253 = smul.addr %s252, 32
          %s254 = smul.addr %s253, 4
          %s255 = scalar_lea.vmem %s2, %s254
        $region36: #{vae_attention_block.3} parent=23 // pred_fallthru
          _
        // Predicated region
        $region37: #{vae_attention_block.3} parent=23 // pred_check
          %p256 = pneg %p126
        $region38: #{vae_attention_block.3} parent=23 // pred_check_branch
          %258 = sbr.rel (%p256) target = $region40
        $region39: #{vae_attention_block.3} parent=23 // pred_region
          %s259 = sand.u32 %s116, 1
          %s260 = sand.u32 %s116, 1
          %s261 = smul.addr %s260, 128
          %s262 = scalar_lea.vmem [#allocation2], %s261
          %s263 = smul.addr %s19, 32
          %s264 = sadd.s32 %s20, %s263
          %s265 = smul.addr %s264, 8
          %s266 = scalar_lea.vmem %s3, %s265
          // Predicated region
          $region41: #{vae_attention_block.3} parent=39 // pred_check
            _
          $region42: #{vae_attention_block.3} parent=39 // pred_check_branch
            %268 = sbr.rel (0) target = $region44
          $region43: #{vae_attention_block.3} parent=39 // pred_region
            // Predicated region
            $region45: #{vae_attention_block.3} parent=43 // pred_check
              _
            $region46: #{vae_attention_block.3} parent=43 // pred_check_branch
              %270 = sbr.rel (0) target = $region48
            $region47: #{vae_attention_block.3} parent=43 // pred_region
              // Predicated region
              $region60: #{vae_attention_block.3} parent=47 // pred_check
                _
              $region61: #{vae_attention_block.3} parent=47 // pred_check_branch
                %316 = sbr.rel (0) target = $region63
              $region62: #{vae_attention_block.3} parent=47 // pred_region
                loop: start=0, step=1, limit=1
                $region64: #{vae_attention_block.3} parent=62 // loop_pre_header
                  _
                $region65: #{vae_attention_block.3} parent=62 // loop_header
                  %s318 = sphi 0, %s322
                  %p319 = scmp.ge.s32.totalorder %s318, 1
                  %s323 = sphi %s266, %s266
                  %s324 = sphi %s262, %s262
                $region66: #{vae_attention_block.3} parent=62 // loop_header_branch
                  %321 = sbr.rel (%p319) target = $region70
                $region67: #{vae_attention_block.3} parent=62 // loop_body
                  %v325 = vld [vmem:[%s323] sm:$0xff]
                  %326 = vst [vmem:[%s324] sm:$0xff] %v325
                  %v327 = vld [vmem:[%s323 + $0x10] sm:$0xff]
                  %328 = vst [vmem:[%s324 + $0x8] sm:$0xff] %v327
                  %v329 = vld [vmem:[%s323 + $0x20] sm:$0xff]
                  %330 = vst [vmem:[%s324 + $0x10] sm:$0xff] %v329
                  %v331 = vld [vmem:[%s323 + $0x30] sm:$0xff]
                  %332 = vst [vmem:[%s324 + $0x18] sm:$0xff] %v331
                  %v333 = vld [vmem:[%s323 + $0x40] sm:$0xff]
                  %334 = vst [vmem:[%s324 + $0x20] sm:$0xff] %v333
                  %v335 = vld [vmem:[%s323 + $0x50] sm:$0xff]
                  %336 = vst [vmem:[%s324 + $0x28] sm:$0xff] %v335
                  %v337 = vld [vmem:[%s323 + $0x60] sm:$0xff]
                  %338 = vst [vmem:[%s324 + $0x30] sm:$0xff] %v337
                  %v339 = vld [vmem:[%s323 + $0x70] sm:$0xff]
                  %340 = vst [vmem:[%s324 + $0x38] sm:$0xff] %v339
                  %v341 = vld [vmem:[%s323 + $0x80] sm:$0xff]
                  %342 = vst [vmem:[%s324 + $0x40] sm:$0xff] %v341
                  %v343 = vld [vmem:[%s323 + $0x90] sm:$0xff]
                  %344 = vst [vmem:[%s324 + $0x48] sm:$0xff] %v343
                  %v345 = vld [vmem:[%s323 + $0xa0] sm:$0xff]
                  %346 = vst [vmem:[%s324 + $0x50] sm:$0xff] %v345
                  %v347 = vld [vmem:[%s323 + $0xb0] sm:$0xff]
                  %348 = vst [vmem:[%s324 + $0x58] sm:$0xff] %v347
                  %v349 = vld [vmem:[%s323 + $0xc0] sm:$0xff]
                  %350 = vst [vmem:[%s324 + $0x60] sm:$0xff] %v349
                  %v351 = vld [vmem:[%s323 + $0xd0] sm:$0xff]
                  %352 = vst [vmem:[%s324 + $0x68] sm:$0xff] %v351
                  %v353 = vld [vmem:[%s323 + $0xe0] sm:$0xff]
                  %354 = vst [vmem:[%s324 + $0x70] sm:$0xff] %v353
                  %v355 = vld [vmem:[%s323 + $0xf0] sm:$0xff]
                  %356 = vst [vmem:[%s324 + $0x78] sm:$0xff] %v355
                $region68: #{vae_attention_block.3} parent=62 // loop_footer
                  %s322 = sadd.s32 1, %s318
                $region69: #{vae_attention_block.3} parent=62 // loop_footer_branch
                  %317 = sbr.rel target = $region65
                $region70: #{vae_attention_block.3} parent=62 // loop_exit
                  _
              $region63: #{vae_attention_block.3} parent=47 // pred_fallthru
                _
              // Predicated region
              $region71: #{vae_attention_block.3} parent=47 // pred_check
                _
              $region72: #{vae_attention_block.3} parent=47 // pred_check_branch
                %358 = sbr.rel target = $region74
              $region73: #{vae_attention_block.3} parent=47 // pred_region
                _
              $region74: #{vae_attention_block.3} parent=47 // pred_fallthru
                _
            $region48: #{vae_attention_block.3} parent=43 // pred_fallthru
              _
            // Predicated region
            $region49: #{vae_attention_block.3} parent=43 // pred_check
              _
            $region50: #{vae_attention_block.3} parent=43 // pred_check_branch
              %272 = sbr.rel target = $region52
            $region51: #{vae_attention_block.3} parent=43 // pred_region
              %s274 = ssub.s32 256, 1
              loop: start=0, step=1, limit=1
              $region53: #{vae_attention_block.3} parent=51 // loop_pre_header
                _
              $region54: #{vae_attention_block.3} parent=51 // loop_header
                %s276 = sphi 0, %s280
                %p277 = scmp.ge.s32.totalorder %s276, 1
                %s281 = sphi %s266, %s266
                %s282 = sphi %s262, %s262
              $region55: #{vae_attention_block.3} parent=51 // loop_header_branch
                %279 = sbr.rel (%p277) target = $region59
              $region56: #{vae_attention_block.3} parent=51 // loop_body
                %v283 = vld [vmem:[%s281] sm:%s274]
                %284 = vst [vmem:[%s282] sm:%s274] %v283
                %v285 = vld [vmem:[%s281 + $0x10] sm:%s274]
                %286 = vst [vmem:[%s282 + $0x8] sm:%s274] %v285
                %v287 = vld [vmem:[%s281 + $0x20] sm:%s274]
                %288 = vst [vmem:[%s282 + $0x10] sm:%s274] %v287
                %v289 = vld [vmem:[%s281 + $0x30] sm:%s274]
                %290 = vst [vmem:[%s282 + $0x18] sm:%s274] %v289
                %v291 = vld [vmem:[%s281 + $0x40] sm:%s274]
                %292 = vst [vmem:[%s282 + $0x20] sm:%s274] %v291
                %v293 = vld [vmem:[%s281 + $0x50] sm:%s274]
                %294 = vst [vmem:[%s282 + $0x28] sm:%s274] %v293
                %v295 = vld [vmem:[%s281 + $0x60] sm:%s274]
                %296 = vst [vmem:[%s282 + $0x30] sm:%s274] %v295
                %v297 = vld [vmem:[%s281 + $0x70] sm:%s274]
                %298 = vst [vmem:[%s282 + $0x38] sm:%s274] %v297
                %v299 = vld [vmem:[%s281 + $0x80] sm:%s274]
                %300 = vst [vmem:[%s282 + $0x40] sm:%s274] %v299
                %v301 = vld [vmem:[%s281 + $0x90] sm:%s274]
                %302 = vst [vmem:[%s282 + $0x48] sm:%s274] %v301
                %v303 = vld [vmem:[%s281 + $0xa0] sm:%s274]
                %304 = vst [vmem:[%s282 + $0x50] sm:%s274] %v303
                %v305 = vld [vmem:[%s281 + $0xb0] sm:%s274]
                %306 = vst [vmem:[%s282 + $0x58] sm:%s274] %v305
                %v307 = vld [vmem:[%s281 + $0xc0] sm:%s274]
                %308 = vst [vmem:[%s282 + $0x60] sm:%s274] %v307
                %v309 = vld [vmem:[%s281 + $0xd0] sm:%s274]
                %310 = vst [vmem:[%s282 + $0x68] sm:%s274] %v309
                %v311 = vld [vmem:[%s281 + $0xe0] sm:%s274]
                %312 = vst [vmem:[%s282 + $0x70] sm:%s274] %v311
                %v313 = vld [vmem:[%s281 + $0xf0] sm:%s274]
                %314 = vst [vmem:[%s282 + $0x78] sm:%s274] %v313
              $region57: #{vae_attention_block.3} parent=51 // loop_footer
                %s280 = sadd.s32 1, %s276
              $region58: #{vae_attention_block.3} parent=51 // loop_footer_branch
                %275 = sbr.rel target = $region54
              $region59: #{vae_attention_block.3} parent=51 // loop_exit
                _
            $region52: #{vae_attention_block.3} parent=43 // pred_fallthru
              _
          $region44: #{vae_attention_block.3} parent=39 // pred_fallthru
            _
          %359 = vnop
        $region40: #{vae_attention_block.3} parent=23 // pred_fallthru
          _
      $region24: #{vae_attention_block.3} parent=5 // pred_fallthru
        _
      %p360 = scmp.le.s32.totalorder 1, %s12
      %p361 = scmp.lt.s32.totalorder %s12, 5
      %p362 = pnand %p360, %p361
      %p363 = pneg %p362
      // Predicated region
      $region75: #{vae_attention_block.3} parent=5 // pred_check
        _
      $region76: #{vae_attention_block.3} parent=5 // pred_check_branch
        %365 = sbr.rel (%p362) target = $region78
      $region77: #{vae_attention_block.3} parent=5 // pred_region
        %s366 = ssub.s32 %s12, 1
        %s367 = sand.u32 %s119, 1
        %s368 = sand.u32 %s119, 1
        %s369 = smul.addr %s368, 128
        %s370 = scalar_lea.vmem [#allocation2], %s369
        // Predicated region
        $region79: #{vae_attention_block.3} parent=77 // pred_check
          %p371 = pneg %p132
        $region80: #{vae_attention_block.3} parent=77 // pred_check_branch
          %373 = sbr.rel (%p371) target = $region82
        $region81: #{vae_attention_block.3} parent=77 // pred_region
          _
        $region82: #{vae_attention_block.3} parent=77 // pred_fallthru
          _
        %s374 = smul.u32 16, %s22
        %p375 = scmp.lt.s32.totalorder %s21, 1
        %s376 = scalar_select %p375, %s21, 1
        %p377 = scmp.lt.s32.totalorder %s374, 31
        %s378 = scalar_select %p377, %s374, 31
        %s379 = smul.addr %s376, 32
        %s380 = sadd.s32 %s378, %s379
        %s381 = smul.addr %s380, 4
        %s382 = scalar_lea.vmem %s0, %s381
        %p383 = pneg %p52
        %p384 = pneg %p49
        %p385 = scmp.lt.s32.totalorder %s21, 1
        %s386 = scalar_select %p385, %s21, 1
        %s387 = smul.addr %s386, 32
        %s388 = smul.addr %s387, 4
        %s389 = scalar_lea.vmem %s1, %s388
        %p390 = pneg %p78
        %p391 = pneg %p75
        %p392 = scmp.lt.s32.totalorder %s21, 1
        %s393 = scalar_select %p392, %s21, 1
        %s394 = smul.addr %s393, 32
        %s395 = smul.addr %s394, 4
        %s396 = scalar_lea.vmem %s2, %s395
        %p397 = pneg %p104
        %p398 = pneg %p101
        %s399 = sand.u32 %s119, 1
        %s400 = sand.u32 %s119, 1
        %s401 = smul.addr %s400, 128
        %s402 = scalar_lea.vmem [#allocation2], %s401
        %p403 = pneg %p132
        %p404 = pneg %p129
        %p405 = pneg %p153
        %p406 = pneg %p150
        %p407 = pneg %p174
        %p408 = pneg %p171
        %p409 = pneg %p202
        %p410 = pneg %p199
        %s411 = sand.u32 %s189, 1
        %s412 = sand.u32 %s189, 1
        %s413 = smul.addr %s412, 128
        %s414 = scalar_lea.vmem [#allocation3], %s413
        %s415 = smul.u32 16, %s22
        %p416 = scmp.lt.s32.totalorder %s21, 1
        %s417 = scalar_select %p416, %s21, 1
        %p418 = scmp.lt.s32.totalorder %s415, 31
        %s419 = scalar_select %p418, %s415, 31
        %s420 = smul.addr %s417, 32
        %s421 = sadd.s32 %s419, %s420
        %s422 = smul.addr %s421, 4
        %s423 = scalar_lea.vmem %s0, %s422
        %s424 = smul.u32 16, %s22
        %p425 = scmp.lt.s32.totalorder %s21, 1
        %s426 = scalar_select %p425, %s21, 1
        %s427 = smul.addr %s426, 32
        %s428 = smul.addr %s427, 4
        %s429 = scalar_lea.vmem %s1, %s428
        %p430 = scmp.lt.s32.totalorder %s21, 1
        %s431 = scalar_select %p430, %s21, 1
        %s432 = smul.addr %s431, 32
        %s433 = smul.addr %s432, 4
        %s434 = scalar_lea.vmem %s2, %s433
        %v435 = vld [vmem:[%s423] sm:$0xf]
        %v436 = vld [vmem:[%s423 + $0x4] sm:$0xf]
        %v437 = vld [vmem:[%s423 + $0x8] sm:$0xf]
        %v438 = vld [vmem:[%s423 + $0xc] sm:$0xf]
        %v439 = vld [vmem:[%s423 + $0x10] sm:$0xf]
        %v440 = vld [vmem:[%s423 + $0x14] sm:$0xf]
        %v441 = vld [vmem:[%s423 + $0x18] sm:$0xf]
        %v442 = vld [vmem:[%s423 + $0x1c] sm:$0xf]
        %v443 = vld [vmem:[%s423 + $0x20] sm:$0xf]
        %v444 = vld [vmem:[%s423 + $0x24] sm:$0xf]
        %v445 = vld [vmem:[%s423 + $0x28] sm:$0xf]
        %v446 = vld [vmem:[%s423 + $0x2c] sm:$0xf]
        %v447 = vld [vmem:[%s423 + $0x30] sm:$0xf]
        %v448 = vld [vmem:[%s423 + $0x34] sm:$0xf]
        %v449 = vld [vmem:[%s423 + $0x38] sm:$0xf]
        %v450 = vld [vmem:[%s423 + $0x3c] sm:$0xf]
        %v451 = vld [vmem:[%s429] sm:$0xf]
        %v452 = vld [vmem:[%s429 + $0x4] sm:$0xf]
        %v453 = vld [vmem:[%s429 + $0x8] sm:$0xf]
        %v454 = vld [vmem:[%s429 + $0xc] sm:$0xf]
        %v455 = vld [vmem:[%s429 + $0x10] sm:$0xf]
        %v456 = vld [vmem:[%s429 + $0x14] sm:$0xf]
        %v457 = vld [vmem:[%s429 + $0x18] sm:$0xf]
        %v458 = vld [vmem:[%s429 + $0x1c] sm:$0xf]
        %v459 = vld [vmem:[%s429 + $0x20] sm:$0xf]
        %v460 = vld [vmem:[%s429 + $0x24] sm:$0xf]
        %v461 = vld [vmem:[%s429 + $0x28] sm:$0xf]
        %v462 = vld [vmem:[%s429 + $0x2c] sm:$0xf]
        %v463 = vld [vmem:[%s429 + $0x30] sm:$0xf]
        %v464 = vld [vmem:[%s429 + $0x34] sm:$0xf]
        %v465 = vld [vmem:[%s429 + $0x38] sm:$0xf]
        %v466 = vld [vmem:[%s429 + $0x3c] sm:$0xf]
        %v467 = vld [vmem:[%s429 + $0x40] sm:$0xf]
        %v468 = vld [vmem:[%s429 + $0x44] sm:$0xf]
        %v469 = vld [vmem:[%s429 + $0x48] sm:$0xf]
        %v470 = vld [vmem:[%s429 + $0x4c] sm:$0xf]
        %v471 = vld [vmem:[%s429 + $0x50] sm:$0xf]
        %v472 = vld [vmem:[%s429 + $0x54] sm:$0xf]
        %v473 = vld [vmem:[%s429 + $0x58] sm:$0xf]
        %v474 = vld [vmem:[%s429 + $0x5c] sm:$0xf]
        %v475 = vld [vmem:[%s429 + $0x60] sm:$0xf]
        %v476 = vld [vmem:[%s429 + $0x64] sm:$0xf]
        %v477 = vld [vmem:[%s429 + $0x68] sm:$0xf]
        %v478 = vld [vmem:[%s429 + $0x6c] sm:$0xf]
        %v479 = vld [vmem:[%s429 + $0x70] sm:$0xf]
        %v480 = vld [vmem:[%s429 + $0x74] sm:$0xf]
        %v481 = vld [vmem:[%s429 + $0x78] sm:$0xf]
        %v482 = vld [vmem:[%s429 + $0x7c] sm:$0xf]
        %v483 = vld [vmem:[%s434] sm:$0xf]
        %v484 = vld [vmem:[%s434 + $0x4] sm:$0xf]
        %v485 = vld [vmem:[%s434 + $0x8] sm:$0xf]
        %v486 = vld [vmem:[%s434 + $0xc] sm:$0xf]
        %v487 = vld [vmem:[%s434 + $0x10] sm:$0xf]
        %v488 = vld [vmem:[%s434 + $0x14] sm:$0xf]
        %v489 = vld [vmem:[%s434 + $0x18] sm:$0xf]
        %v490 = vld [vmem:[%s434 + $0x1c] sm:$0xf]
        %v491 = vld [vmem:[%s434 + $0x20] sm:$0xf]
        %v492 = vld [vmem:[%s434 + $0x24] sm:$0xf]
        %v493 = vld [vmem:[%s434 + $0x28] sm:$0xf]
        %v494 = vld [vmem:[%s434 + $0x2c] sm:$0xf]
        %v495 = vld [vmem:[%s434 + $0x30] sm:$0xf]
        %v496 = vld [vmem:[%s434 + $0x34] sm:$0xf]
        %v497 = vld [vmem:[%s434 + $0x38] sm:$0xf]
        %v498 = vld [vmem:[%s434 + $0x3c] sm:$0xf]
        %v499 = vld [vmem:[%s434 + $0x40] sm:$0xf]
        %v500 = vld [vmem:[%s434 + $0x44] sm:$0xf]
        %v501 = vld [vmem:[%s434 + $0x48] sm:$0xf]
        %v502 = vld [vmem:[%s434 + $0x4c] sm:$0xf]
        %v503 = vld [vmem:[%s434 + $0x50] sm:$0xf]
        %v504 = vld [vmem:[%s434 + $0x54] sm:$0xf]
        %v505 = vld [vmem:[%s434 + $0x58] sm:$0xf]
        %v506 = vld [vmem:[%s434 + $0x5c] sm:$0xf]
        %v507 = vld [vmem:[%s434 + $0x60] sm:$0xf]
        %v508 = vld [vmem:[%s434 + $0x64] sm:$0xf]
        %v509 = vld [vmem:[%s434 + $0x68] sm:$0xf]
        %v510 = vld [vmem:[%s434 + $0x6c] sm:$0xf]
        %v511 = vld [vmem:[%s434 + $0x70] sm:$0xf]
        %v512 = vld [vmem:[%s434 + $0x74] sm:$0xf]
        %v513 = vld [vmem:[%s434 + $0x78] sm:$0xf]
        %v514 = vld [vmem:[%s434 + $0x7c] sm:$0xf]
        %v531 = vunpack.c.l.b16 %v435
        %v532 = vunpack.c.l.b16 %v436
        %v533 = vunpack.c.l.b16 %v437
        %v534 = vunpack.c.l.b16 %v438
        %v535 = vunpack.c.l.b16 %v439
        %v536 = vunpack.c.l.b16 %v440
        %v537 = vunpack.c.l.b16 %v441
        %v538 = vunpack.c.l.b16 %v442
        %v539 = vunpack.c.l.b16 %v443
        %v540 = vunpack.c.l.b16 %v444
        %v541 = vunpack.c.l.b16 %v445
        %v542 = vunpack.c.l.b16 %v446
        %v543 = vunpack.c.l.b16 %v447
        %v544 = vunpack.c.l.b16 %v448
        %v545 = vunpack.c.l.b16 %v449
        %v546 = vunpack.c.l.b16 %v450
        %v547 = vpack.c.b16 %v532, %v531
        %v548 = vpack.c.b16 %v534, %v533
        %v549 = vpack.c.b16 %v536, %v535
        %v550 = vpack.c.b16 %v538, %v537
        %v551 = vpack.c.b16 %v540, %v539
        %v552 = vpack.c.b16 %v542, %v541
        %v553 = vpack.c.b16 %v544, %v543
        %v554 = vpack.c.b16 %v546, %v545
        %v595 = vunpack.c.l.b16 %v451
        %v596 = vunpack.c.l.b16 %v452
        %v597 = vunpack.c.l.b16 %v453
        %v598 = vunpack.c.l.b16 %v454
        %v599 = vunpack.c.l.b16 %v455
        %v600 = vunpack.c.l.b16 %v456
        %v601 = vunpack.c.l.b16 %v457
        %v602 = vunpack.c.l.b16 %v458
        %v603 = vunpack.c.l.b16 %v459
        %v604 = vunpack.c.l.b16 %v460
        %v605 = vunpack.c.l.b16 %v461
        %v606 = vunpack.c.l.b16 %v462
        %v607 = vunpack.c.l.b16 %v463
        %v608 = vunpack.c.l.b16 %v464
        %v609 = vunpack.c.l.b16 %v465
        %v610 = vunpack.c.l.b16 %v466
        %v611 = vunpack.c.l.b16 %v467
        %v612 = vunpack.c.l.b16 %v468
        %v613 = vunpack.c.l.b16 %v469
        %v614 = vunpack.c.l.b16 %v470
        %v615 = vunpack.c.l.b16 %v471
        %v616 = vunpack.c.l.b16 %v472
        %v617 = vunpack.c.l.b16 %v473
        %v618 = vunpack.c.l.b16 %v474
        %v619 = vunpack.c.l.b16 %v475
        %v620 = vunpack.c.l.b16 %v476
        %v621 = vunpack.c.l.b16 %v477
        %v622 = vunpack.c.l.b16 %v478
        %v623 = vunpack.c.l.b16 %v479
        %v624 = vunpack.c.l.b16 %v480
        %v625 = vunpack.c.l.b16 %v481
        %v626 = vunpack.c.l.b16 %v482
        %v627 = vpack.c.b16 %v596, %v595
        %v628 = vpack.c.b16 %v598, %v597
        %v629 = vpack.c.b16 %v600, %v599
        %v630 = vpack.c.b16 %v602, %v601
        %v631 = vpack.c.b16 %v604, %v603
        %v632 = vpack.c.b16 %v606, %v605
        %v633 = vpack.c.b16 %v608, %v607
        %v634 = vpack.c.b16 %v610, %v609
        %v635 = vpack.c.b16 %v612, %v611
        %v636 = vpack.c.b16 %v614, %v613
        %v637 = vpack.c.b16 %v616, %v615
        %v638 = vpack.c.b16 %v618, %v617
        %v639 = vpack.c.b16 %v620, %v619
        %v640 = vpack.c.b16 %v622, %v621
        %v641 = vpack.c.b16 %v624, %v623
        %v642 = vpack.c.b16 %v626, %v625
        %659 = vmatpush.bf16.xpose.msra.mxu0 %v634
        %660 = vmatpush.bf16.xpose.msra.mxu0 %v633
        %661 = vmatpush.bf16.xpose.msra.mxu0 %v632
        %662 = vmatpush.bf16.xpose.msra.mxu0 %v631
        %663 = vmatpush.bf16.xpose.msra.mxu0 %v630
        %664 = vmatpush.bf16.xpose.msra.mxu0 %v629
        %665 = vmatpush.bf16.xpose.msra.mxu0 %v628
        %666 = vmatpush.bf16.xpose.msra.mxu0 %v627
        %667 = vmatmul.bf16.gmra.mxu0 %v547
        %v668 = vpop.f32.mrf.mxu0
        %v669 = vadd.f32 0.0, %v668
        %v670 = vpop.f32.mrf.mxu0
        %v671 = vadd.f32 0.0, %v670
        %672 = vmatmul.bf16.gmra.mxu0 %v548
        %v673 = vpop.f32.mrf.mxu0
        %v674 = vadd.f32 0.0, %v673
        %v675 = vpop.f32.mrf.mxu0
        %v676 = vadd.f32 0.0, %v675
        %677 = vmatmul.bf16.gmra.mxu0 %v549
        %v678 = vpop.f32.mrf.mxu0
        %v679 = vadd.f32 0.0, %v678
        %v680 = vpop.f32.mrf.mxu0
        %v681 = vadd.f32 0.0, %v680
        %682 = vmatmul.bf16.gmra.mxu0 %v550
        %v683 = vpop.f32.mrf.mxu0
        %v684 = vadd.f32 0.0, %v683
        %v685 = vpop.f32.mrf.mxu0
        %v686 = vadd.f32 0.0, %v685
        %687 = vmatmul.bf16.gmra.mxu0 %v551
        %v688 = vpop.f32.mrf.mxu0
        %v689 = vadd.f32 0.0, %v688
        %v690 = vpop.f32.mrf.mxu0
        %v691 = vadd.f32 0.0, %v690
        %692 = vmatmul.bf16.gmra.mxu0 %v552
        %v693 = vpop.f32.mrf.mxu0
        %v694 = vadd.f32 0.0, %v693
        %v695 = vpop.f32.mrf.mxu0
        %v696 = vadd.f32 0.0, %v695
        %697 = vmatmul.bf16.gmra.mxu0 %v553
        %v698 = vpop.f32.mrf.mxu0
        %v699 = vadd.f32 0.0, %v698
        %v700 = vpop.f32.mrf.mxu0
        %v701 = vadd.f32 0.0, %v700
        %702 = vmatmul.bf16.gmra.mxu0 %v554
        %v703 = vpop.f32.mrf.mxu0
        %v704 = vadd.f32 0.0, %v703
        %v705 = vpop.f32.mrf.mxu0
        %v706 = vadd.f32 0.0, %v705
        %707 = vdwg.mxu0
        %708 = vmatpush.bf16.xpose.msra.mxu0 %v642
        %709 = vmatpush.bf16.xpose.msra.mxu0 %v641
        %710 = vmatpush.bf16.xpose.msra.mxu0 %v640
        %711 = vmatpush.bf16.xpose.msra.mxu0 %v639
        %712 = vmatpush.bf16.xpose.msra.mxu0 %v638
        %713 = vmatpush.bf16.xpose.msra.mxu0 %v637
        %714 = vmatpush.bf16.xpose.msra.mxu0 %v636
        %715 = vmatpush.bf16.xpose.msra.mxu0 %v635
        %716 = vmatmul.bf16.gmra.mxu0 %v547
        %v717 = vpop.f32.mrf.mxu0
        %v718 = vadd.f32 0.0, %v717
        %v719 = vpop.f32.mrf.mxu0
        %v720 = vadd.f32 0.0, %v719
        %721 = vmatmul.bf16.gmra.mxu0 %v548
        %v722 = vpop.f32.mrf.mxu0
        %v723 = vadd.f32 0.0, %v722
        %v724 = vpop.f32.mrf.mxu0
        %v725 = vadd.f32 0.0, %v724
        %726 = vmatmul.bf16.gmra.mxu0 %v549
        %v727 = vpop.f32.mrf.mxu0
        %v728 = vadd.f32 0.0, %v727
        %v729 = vpop.f32.mrf.mxu0
        %v730 = vadd.f32 0.0, %v729
        %731 = vmatmul.bf16.gmra.mxu0 %v550
        %v732 = vpop.f32.mrf.mxu0
        %v733 = vadd.f32 0.0, %v732
        %v734 = vpop.f32.mrf.mxu0
        %v735 = vadd.f32 0.0, %v734
        %736 = vmatmul.bf16.gmra.mxu0 %v551
        %v737 = vpop.f32.mrf.mxu0
        %v738 = vadd.f32 0.0, %v737
        %v739 = vpop.f32.mrf.mxu0
        %v740 = vadd.f32 0.0, %v739
        %741 = vmatmul.bf16.gmra.mxu0 %v552
        %v742 = vpop.f32.mrf.mxu0
        %v743 = vadd.f32 0.0, %v742
        %v744 = vpop.f32.mrf.mxu0
        %v745 = vadd.f32 0.0, %v744
        %746 = vmatmul.bf16.gmra.mxu0 %v553
        %v747 = vpop.f32.mrf.mxu0
        %v748 = vadd.f32 0.0, %v747
        %v749 = vpop.f32.mrf.mxu0
        %v750 = vadd.f32 0.0, %v749
        %751 = vmatmul.bf16.gmra.mxu0 %v554
        %v752 = vpop.f32.mrf.mxu0
        %v753 = vadd.f32 0.0, %v752
        %v754 = vpop.f32.mrf.mxu0
        %v755 = vadd.f32 0.0, %v754
        %756 = vdwg.mxu0
        %v757 = vmax.f32 %v669, %v718
        %758 = vmax.xlane.f32.xlu0 %v757
        %v759 = vpop.xlane.xlu0 %758
        %v760 = vmax.f32 %v671, %v720
        %761 = vmax.xlane.f32.xlu0 %v760
        %v762 = vpop.xlane.xlu0 %761
        %v763 = vmax.f32 %v674, %v723
        %764 = vmax.xlane.f32.xlu0 %v763
        %v765 = vpop.xlane.xlu0 %764
        %v766 = vmax.f32 %v676, %v725
        %767 = vmax.xlane.f32.xlu0 %v766
        %v768 = vpop.xlane.xlu0 %767
        %v769 = vmax.f32 %v679, %v728
        %770 = vmax.xlane.f32.xlu0 %v769
        %v771 = vpop.xlane.xlu0 %770
        %v772 = vmax.f32 %v681, %v730
        %773 = vmax.xlane.f32.xlu0 %v772
        %v774 = vpop.xlane.xlu0 %773
        %v775 = vmax.f32 %v684, %v733
        %776 = vmax.xlane.f32.xlu0 %v775
        %v777 = vpop.xlane.xlu0 %776
        %v778 = vmax.f32 %v686, %v735
        %779 = vmax.xlane.f32.xlu0 %v778
        %v780 = vpop.xlane.xlu0 %779
        %v781 = vmax.f32 %v689, %v738
        %782 = vmax.xlane.f32.xlu0 %v781
        %v783 = vpop.xlane.xlu0 %782
        %v784 = vmax.f32 %v691, %v740
        %785 = vmax.xlane.f32.xlu0 %v784
        %v786 = vpop.xlane.xlu0 %785
        %v787 = vmax.f32 %v694, %v743
        %788 = vmax.xlane.f32.xlu0 %v787
        %v789 = vpop.xlane.xlu0 %788
        %v790 = vmax.f32 %v696, %v745
        %791 = vmax.xlane.f32.xlu0 %v790
        %v792 = vpop.xlane.xlu0 %791
        %v793 = vmax.f32 %v699, %v748
        %794 = vmax.xlane.f32.xlu0 %v793
        %v795 = vpop.xlane.xlu0 %794
        %v796 = vmax.f32 %v701, %v750
        %797 = vmax.xlane.f32.xlu0 %v796
        %v798 = vpop.xlane.xlu0 %797
        %v799 = vmax.f32 %v704, %v753
        %800 = vmax.xlane.f32.xlu0 %v799
        %v801 = vpop.xlane.xlu0 %800
        %v802 = vmax.f32 %v706, %v755
        %803 = vmax.xlane.f32.xlu0 %v802
        %v804 = vpop.xlane.xlu0 %803
        %v805 = vsub.f32 %v669, %v759
        %v806 = vsub.f32 %v718, %v759
        %v807 = vsub.f32 %v671, %v762
        %v808 = vsub.f32 %v720, %v762
        %v809 = vsub.f32 %v674, %v765
        %v810 = vsub.f32 %v723, %v765
        %v811 = vsub.f32 %v676, %v768
        %v812 = vsub.f32 %v725, %v768
        %v813 = vsub.f32 %v679, %v771
        %v814 = vsub.f32 %v728, %v771
        %v815 = vsub.f32 %v681, %v774
        %v816 = vsub.f32 %v730, %v774
        %v817 = vsub.f32 %v684, %v777
        %v818 = vsub.f32 %v733, %v777
        %v819 = vsub.f32 %v686, %v780
        %v820 = vsub.f32 %v735, %v780
        %v821 = vsub.f32 %v689, %v783
        %v822 = vsub.f32 %v738, %v783
        %v823 = vsub.f32 %v691, %v786
        %v824 = vsub.f32 %v740, %v786
        %v825 = vsub.f32 %v694, %v789
        %v826 = vsub.f32 %v743, %v789
        %v827 = vsub.f32 %v696, %v792
        %v828 = vsub.f32 %v745, %v792
        %v829 = vsub.f32 %v699, %v795
        %v830 = vsub.f32 %v748, %v795
        %v831 = vsub.f32 %v701, %v798
        %v832 = vsub.f32 %v750, %v798
        %v833 = vsub.f32 %v704, %v801
        %v834 = vsub.f32 %v753, %v801
        %v835 = vsub.f32 %v706, %v804
        %v836 = vsub.f32 %v755, %v804
        %v837 = vmul.f32 %v805, 1.442695
        %v838 = vpow.pop %v837
        %v839 = vmul.f32 %v806, 1.442695
        %v840 = vpow.pop %v839
        %v841 = vmul.f32 %v807, 1.442695
        %v842 = vpow.pop %v841
        %v843 = vmul.f32 %v808, 1.442695
        %v844 = vpow.pop %v843
        %v845 = vmul.f32 %v809, 1.442695
        %v846 = vpow.pop %v845
        %v847 = vmul.f32 %v810, 1.442695
        %v848 = vpow.pop %v847
        %v849 = vmul.f32 %v811, 1.442695
        %v850 = vpow.pop %v849
        %v851 = vmul.f32 %v812, 1.442695
        %v852 = vpow.pop %v851
        %v853 = vmul.f32 %v813, 1.442695
        %v854 = vpow.pop %v853
        %v855 = vmul.f32 %v814, 1.442695
        %v856 = vpow.pop %v855
        %v857 = vmul.f32 %v815, 1.442695
        %v858 = vpow.pop %v857
        %v859 = vmul.f32 %v816, 1.442695
        %v860 = vpow.pop %v859
        %v861 = vmul.f32 %v817, 1.442695
        %v862 = vpow.pop %v861
        %v863 = vmul.f32 %v818, 1.442695
        %v864 = vpow.pop %v863
        %v865 = vmul.f32 %v819, 1.442695
        %v866 = vpow.pop %v865
        %v867 = vmul.f32 %v820, 1.442695
        %v868 = vpow.pop %v867
        %v869 = vmul.f32 %v821, 1.442695
        %v870 = vpow.pop %v869
        %v871 = vmul.f32 %v822, 1.442695
        %v872 = vpow.pop %v871
        %v873 = vmul.f32 %v823, 1.442695
        %v874 = vpow.pop %v873
        %v875 = vmul.f32 %v824, 1.442695
        %v876 = vpow.pop %v875
        %v877 = vmul.f32 %v825, 1.442695
        %v878 = vpow.pop %v877
        %v879 = vmul.f32 %v826, 1.442695
        %v880 = vpow.pop %v879
        %v881 = vmul.f32 %v827, 1.442695
        %v882 = vpow.pop %v881
        %v883 = vmul.f32 %v828, 1.442695
        %v884 = vpow.pop %v883
        %v885 = vmul.f32 %v829, 1.442695
        %v886 = vpow.pop %v885
        %v887 = vmul.f32 %v830, 1.442695
        %v888 = vpow.pop %v887
        %v889 = vmul.f32 %v831, 1.442695
        %v890 = vpow.pop %v889
        %v891 = vmul.f32 %v832, 1.442695
        %v892 = vpow.pop %v891
        %v893 = vmul.f32 %v833, 1.442695
        %v894 = vpow.pop %v893
        %v895 = vmul.f32 %v834, 1.442695
        %v896 = vpow.pop %v895
        %v897 = vmul.f32 %v835, 1.442695
        %v898 = vpow.pop %v897
        %v899 = vmul.f32 %v836, 1.442695
        %v900 = vpow.pop %v899
        %v901 = vadd.f32 %v838, %v840
        %902 = vadd.xlane.f32.xlu0 %v901
        %v903 = vpop.xlane.xlu0 %902
        %v904 = vadd.f32 %v842, %v844
        %905 = vadd.xlane.f32.xlu0 %v904
        %v906 = vpop.xlane.xlu0 %905
        %v907 = vadd.f32 %v846, %v848
        %908 = vadd.xlane.f32.xlu0 %v907
        %v909 = vpop.xlane.xlu0 %908
        %v910 = vadd.f32 %v850, %v852
        %911 = vadd.xlane.f32.xlu0 %v910
        %v912 = vpop.xlane.xlu0 %911
        %v913 = vadd.f32 %v854, %v856
        %914 = vadd.xlane.f32.xlu0 %v913
        %v915 = vpop.xlane.xlu0 %914
        %v916 = vadd.f32 %v858, %v860
        %917 = vadd.xlane.f32.xlu0 %v916
        %v918 = vpop.xlane.xlu0 %917
        %v919 = vadd.f32 %v862, %v864
        %920 = vadd.xlane.f32.xlu0 %v919
        %v921 = vpop.xlane.xlu0 %920
        %v922 = vadd.f32 %v866, %v868
        %923 = vadd.xlane.f32.xlu0 %v922
        %v924 = vpop.xlane.xlu0 %923
        %v925 = vadd.f32 %v870, %v872
        %926 = vadd.xlane.f32.xlu0 %v925
        %v927 = vpop.xlane.xlu0 %926
        %v928 = vadd.f32 %v874, %v876
        %929 = vadd.xlane.f32.xlu0 %v928
        %v930 = vpop.xlane.xlu0 %929
        %v931 = vadd.f32 %v878, %v880
        %932 = vadd.xlane.f32.xlu0 %v931
        %v933 = vpop.xlane.xlu0 %932
        %v934 = vadd.f32 %v882, %v884
        %935 = vadd.xlane.f32.xlu0 %v934
        %v936 = vpop.xlane.xlu0 %935
        %v937 = vadd.f32 %v886, %v888
        %938 = vadd.xlane.f32.xlu0 %v937
        %v939 = vpop.xlane.xlu0 %938
        %v940 = vadd.f32 %v890, %v892
        %941 = vadd.xlane.f32.xlu0 %v940
        %v942 = vpop.xlane.xlu0 %941
        %v943 = vadd.f32 %v894, %v896
        %944 = vadd.xlane.f32.xlu0 %v943
        %v945 = vpop.xlane.xlu0 %944
        %v946 = vadd.f32 %v898, %v900
        %947 = vadd.xlane.f32.xlu0 %v946
        %v948 = vpop.xlane.xlu0 %947
        %v949 = vpack.c.bf16 %v842, %v838
        %v950 = vpack.c.bf16 %v844, %v840
        %v951 = vpack.c.bf16 %v850, %v846
        %v952 = vpack.c.bf16 %v852, %v848
        %v953 = vpack.c.bf16 %v858, %v854
        %v954 = vpack.c.bf16 %v860, %v856
        %v955 = vpack.c.bf16 %v866, %v862
        %v956 = vpack.c.bf16 %v868, %v864
        %v957 = vpack.c.bf16 %v874, %v870
        %v958 = vpack.c.bf16 %v876, %v872
        %v959 = vpack.c.bf16 %v882, %v878
        %v960 = vpack.c.bf16 %v884, %v880
        %v961 = vpack.c.bf16 %v890, %v886
        %v962 = vpack.c.bf16 %v892, %v888
        %v963 = vpack.c.bf16 %v898, %v894
        %v964 = vpack.c.bf16 %v900, %v896
        %v997 = vunpack.c.l.b16 %v483
        %v998 = vunpack.c.l.b16 %v484
        %v999 = vunpack.c.l.b16 %v485
        %v1000 = vunpack.c.l.b16 %v486
        %v1001 = vunpack.c.l.b16 %v487
        %v1002 = vunpack.c.l.b16 %v488
        %v1003 = vunpack.c.l.b16 %v489
        %v1004 = vunpack.c.l.b16 %v490
        %v1005 = vunpack.c.l.b16 %v491
        %v1006 = vunpack.c.l.b16 %v492
        %v1007 = vunpack.c.l.b16 %v493
        %v1008 = vunpack.c.l.b16 %v494
        %v1009 = vunpack.c.l.b16 %v495
        %v1010 = vunpack.c.l.b16 %v496
        %v1011 = vunpack.c.l.b16 %v497
        %v1012 = vunpack.c.l.b16 %v498
        %v1013 = vunpack.c.l.b16 %v499
        %v1014 = vunpack.c.l.b16 %v500
        %v1015 = vunpack.c.l.b16 %v501
        %v1016 = vunpack.c.l.b16 %v502
        %v1017 = vunpack.c.l.b16 %v503
        %v1018 = vunpack.c.l.b16 %v504
        %v1019 = vunpack.c.l.b16 %v505
        %v1020 = vunpack.c.l.b16 %v506
        %v1021 = vunpack.c.l.b16 %v507
        %v1022 = vunpack.c.l.b16 %v508
        %v1023 = vunpack.c.l.b16 %v509
        %v1024 = vunpack.c.l.b16 %v510
        %v1025 = vunpack.c.l.b16 %v511
        %v1026 = vunpack.c.l.b16 %v512
        %v1027 = vunpack.c.l.b16 %v513
        %v1028 = vunpack.c.l.b16 %v514
        %v1029 = vpack.c.b16 %v998, %v997
        %v1030 = vpack.c.b16 %v1000, %v999
        %v1031 = vpack.c.b16 %v1002, %v1001
        %v1032 = vpack.c.b16 %v1004, %v1003
        %v1033 = vpack.c.b16 %v1006, %v1005
        %v1034 = vpack.c.b16 %v1008, %v1007
        %v1035 = vpack.c.b16 %v1010, %v1009
        %v1036 = vpack.c.b16 %v1012, %v1011
        %v1037 = vpack.c.b16 %v1014, %v1013
        %v1038 = vpack.c.b16 %v1016, %v1015
        %v1039 = vpack.c.b16 %v1018, %v1017
        %v1040 = vpack.c.b16 %v1020, %v1019
        %v1041 = vpack.c.b16 %v1022, %v1021
        %v1042 = vpack.c.b16 %v1024, %v1023
        %v1043 = vpack.c.b16 %v1026, %v1025
        %v1044 = vpack.c.b16 %v1028, %v1027
        %1061 = vmatpush.bf16.msra.mxu0 %v1036
        %1062 = vmatpush.bf16.msra.mxu0 %v1035
        %1063 = vmatpush.bf16.msra.mxu0 %v1034
        %1064 = vmatpush.bf16.msra.mxu0 %v1033
        %1065 = vmatpush.bf16.msra.mxu0 %v1032
        %1066 = vmatpush.bf16.msra.mxu0 %v1031
        %1067 = vmatpush.bf16.msra.mxu0 %v1030
        %1068 = vmatpush.bf16.msra.mxu0 %v1029
        %1069 = vmatmul.bf16.gmra.mxu0 %v949
        %v1070 = vpop.f32.mrf.mxu0
        %v1071 = vadd.f32 0.0, %v1070
        %v1072 = vpop.f32.mrf.mxu0
        %v1073 = vadd.f32 0.0, %v1072
        %1074 = vmatmul.bf16.gmra.mxu0 %v951
        %v1075 = vpop.f32.mrf.mxu0
        %v1076 = vadd.f32 0.0, %v1075
        %v1077 = vpop.f32.mrf.mxu0
        %v1078 = vadd.f32 0.0, %v1077
        %1079 = vmatmul.bf16.gmra.mxu0 %v953
        %v1080 = vpop.f32.mrf.mxu0
        %v1081 = vadd.f32 0.0, %v1080
        %v1082 = vpop.f32.mrf.mxu0
        %v1083 = vadd.f32 0.0, %v1082
        %1084 = vmatmul.bf16.gmra.mxu0 %v955
        %v1085 = vpop.f32.mrf.mxu0
        %v1086 = vadd.f32 0.0, %v1085
        %v1087 = vpop.f32.mrf.mxu0
        %v1088 = vadd.f32 0.0, %v1087
        %1089 = vmatmul.bf16.gmra.mxu0 %v957
        %v1090 = vpop.f32.mrf.mxu0
        %v1091 = vadd.f32 0.0, %v1090
        %v1092 = vpop.f32.mrf.mxu0
        %v1093 = vadd.f32 0.0, %v1092
        %1094 = vmatmul.bf16.gmra.mxu0 %v959
        %v1095 = vpop.f32.mrf.mxu0
        %v1096 = vadd.f32 0.0, %v1095
        %v1097 = vpop.f32.mrf.mxu0
        %v1098 = vadd.f32 0.0, %v1097
        %1099 = vmatmul.bf16.gmra.mxu0 %v961
        %v1100 = vpop.f32.mrf.mxu0
        %v1101 = vadd.f32 0.0, %v1100
        %v1102 = vpop.f32.mrf.mxu0
        %v1103 = vadd.f32 0.0, %v1102
        %1104 = vmatmul.bf16.gmra.mxu0 %v963
        %v1105 = vpop.f32.mrf.mxu0
        %v1106 = vadd.f32 0.0, %v1105
        %v1107 = vpop.f32.mrf.mxu0
        %v1108 = vadd.f32 0.0, %v1107
        %1109 = vdwg.mxu0
        %1110 = vmatpush.bf16.msra.mxu0 %v1044
        %1111 = vmatpush.bf16.msra.mxu0 %v1043
        %1112 = vmatpush.bf16.msra.mxu0 %v1042
        %1113 = vmatpush.bf16.msra.mxu0 %v1041
        %1114 = vmatpush.bf16.msra.mxu0 %v1040
        %1115 = vmatpush.bf16.msra.mxu0 %v1039
        %1116 = vmatpush.bf16.msra.mxu0 %v1038
        %1117 = vmatpush.bf16.msra.mxu0 %v1037
        %1118 = vmatmul.bf16.gmra.mxu0 %v950
        %v1119 = vpop.f32.mrf.mxu0
        %v1120 = vadd.f32 %v1071, %v1119
        %v1121 = vpop.f32.mrf.mxu0
        %v1122 = vadd.f32 %v1073, %v1121
        %1123 = vmatmul.bf16.gmra.mxu0 %v952
        %v1124 = vpop.f32.mrf.mxu0
        %v1125 = vadd.f32 %v1076, %v1124
        %v1126 = vpop.f32.mrf.mxu0
        %v1127 = vadd.f32 %v1078, %v1126
        %1128 = vmatmul.bf16.gmra.mxu0 %v954
        %v1129 = vpop.f32.mrf.mxu0
        %v1130 = vadd.f32 %v1081, %v1129
        %v1131 = vpop.f32.mrf.mxu0
        %v1132 = vadd.f32 %v1083, %v1131
        %1133 = vmatmul.bf16.gmra.mxu0 %v956
        %v1134 = vpop.f32.mrf.mxu0
        %v1135 = vadd.f32 %v1086, %v1134
        %v1136 = vpop.f32.mrf.mxu0
        %v1137 = vadd.f32 %v1088, %v1136
        %1138 = vmatmul.bf16.gmra.mxu0 %v958
        %v1139 = vpop.f32.mrf.mxu0
        %v1140 = vadd.f32 %v1091, %v1139
        %v1141 = vpop.f32.mrf.mxu0
        %v1142 = vadd.f32 %v1093, %v1141
        %1143 = vmatmul.bf16.gmra.mxu0 %v960
        %v1144 = vpop.f32.mrf.mxu0
        %v1145 = vadd.f32 %v1096, %v1144
        %v1146 = vpop.f32.mrf.mxu0
        %v1147 = vadd.f32 %v1098, %v1146
        %1148 = vmatmul.bf16.gmra.mxu0 %v962
        %v1149 = vpop.f32.mrf.mxu0
        %v1150 = vadd.f32 %v1101, %v1149
        %v1151 = vpop.f32.mrf.mxu0
        %v1152 = vadd.f32 %v1103, %v1151
        %1153 = vmatmul.bf16.gmra.mxu0 %v964
        %v1154 = vpop.f32.mrf.mxu0
        %v1155 = vadd.f32 %v1106, %v1154
        %v1156 = vpop.f32.mrf.mxu0
        %v1157 = vadd.f32 %v1108, %v1156
        %1158 = vdwg.mxu0
        %v1159 = vrcp.pop %v903
        %v1160 = vrcp.pop %v906
        %v1161 = vrcp.pop %v909
        %v1162 = vrcp.pop %v912
        %v1163 = vrcp.pop %v915
        %v1164 = vrcp.pop %v918
        %v1165 = vrcp.pop %v921
        %v1166 = vrcp.pop %v924
        %v1167 = vrcp.pop %v927
        %v1168 = vrcp.pop %v930
        %v1169 = vrcp.pop %v933
        %v1170 = vrcp.pop %v936
        %v1171 = vrcp.pop %v939
        %v1172 = vrcp.pop %v942
        %v1173 = vrcp.pop %v945
        %v1174 = vrcp.pop %v948
        %v1175 = vmul.f32 %v1120, %v1159
        %v1176 = vmul.f32 %v1122, %v1160
        %v1177 = vmul.f32 %v1125, %v1161
        %v1178 = vmul.f32 %v1127, %v1162
        %v1179 = vmul.f32 %v1130, %v1163
        %v1180 = vmul.f32 %v1132, %v1164
        %v1181 = vmul.f32 %v1135, %v1165
        %v1182 = vmul.f32 %v1137, %v1166
        %v1183 = vmul.f32 %v1140, %v1167
        %v1184 = vmul.f32 %v1142, %v1168
        %v1185 = vmul.f32 %v1145, %v1169
        %v1186 = vmul.f32 %v1147, %v1170
        %v1187 = vmul.f32 %v1150, %v1171
        %v1188 = vmul.f32 %v1152, %v1172
        %v1189 = vmul.f32 %v1155, %v1173
        %v1190 = vmul.f32 %v1157, %v1174
        %v1191 = vpack.c.bf16 %v1176, %v1175
        %v1192 = vpack.c.bf16 %v1178, %v1177
        %v1193 = vpack.c.bf16 %v1180, %v1179
        %v1194 = vpack.c.bf16 %v1182, %v1181
        %v1195 = vpack.c.bf16 %v1184, %v1183
        %v1196 = vpack.c.bf16 %v1186, %v1185
        %v1197 = vpack.c.bf16 %v1188, %v1187
        %v1198 = vpack.c.bf16 %v1190, %v1189
        %v1199 = vld [vmem:[%s4] sm:$0xf]
        %v1200 = vld [vmem:[%s4 + $0x4] sm:$0xf]
        %v1201 = vld [vmem:[%s4 + $0x8] sm:$0xf]
        %v1202 = vld [vmem:[%s4 + $0xc] sm:$0xf]
        %v1203 = vld [vmem:[%s4 + $0x10] sm:$0xf]
        %v1204 = vld [vmem:[%s4 + $0x14] sm:$0xf]
        %v1205 = vld [vmem:[%s4 + $0x18] sm:$0xf]
        %v1206 = vld [vmem:[%s4 + $0x1c] sm:$0xf]
        %v1207 = vld [vmem:[%s4 + $0x20] sm:$0xf]
        %v1208 = vld [vmem:[%s4 + $0x24] sm:$0xf]
        %v1209 = vld [vmem:[%s4 + $0x28] sm:$0xf]
        %v1210 = vld [vmem:[%s4 + $0x2c] sm:$0xf]
        %v1211 = vld [vmem:[%s4 + $0x30] sm:$0xf]
        %v1212 = vld [vmem:[%s4 + $0x34] sm:$0xf]
        %v1213 = vld [vmem:[%s4 + $0x38] sm:$0xf]
        %v1214 = vld [vmem:[%s4 + $0x3c] sm:$0xf]
        %v1215 = vld [vmem:[%s5] sm:$0xff]
        %v1216 = vld [vmem:[%s5 + $0x8] sm:$0xff]
        %v1217 = vld [vmem:[%s5 + $0x10] sm:$0xff]
        %v1218 = vld [vmem:[%s5 + $0x18] sm:$0xff]
        %v1219 = vld [vmem:[%s5 + $0x20] sm:$0xff]
        %v1220 = vld [vmem:[%s5 + $0x28] sm:$0xff]
        %v1221 = vld [vmem:[%s5 + $0x30] sm:$0xff]
        %v1222 = vld [vmem:[%s5 + $0x38] sm:$0xff]
        %v1223 = vld [vmem:[%s5 + $0x40] sm:$0xff]
        %v1224 = vld [vmem:[%s5 + $0x48] sm:$0xff]
        %v1225 = vld [vmem:[%s5 + $0x50] sm:$0xff]
        %v1226 = vld [vmem:[%s5 + $0x58] sm:$0xff]
        %v1227 = vld [vmem:[%s5 + $0x60] sm:$0xff]
        %v1228 = vld [vmem:[%s5 + $0x68] sm:$0xff]
        %v1229 = vld [vmem:[%s5 + $0x70] sm:$0xff]
        %v1230 = vld [vmem:[%s5 + $0x78] sm:$0xff]
        %1232 = vset.pattern.permute.xlu0 0
        %1233 = vperm.xlu0 %1232, %v1215
        %v1234 = vpop.permute.xlu0 %1233
        %1237 = vset.pattern.permute.xlu0 0
        %1238 = vperm.xlu0 %1237, %v1216
        %v1239 = vpop.permute.xlu0 %1238
        %1242 = vset.pattern.permute.xlu0 0
        %1243 = vperm.xlu0 %1242, %v1217
        %v1244 = vpop.permute.xlu0 %1243
        %1247 = vset.pattern.permute.xlu0 0
        %1248 = vperm.xlu0 %1247, %v1218
        %v1249 = vpop.permute.xlu0 %1248
        %1252 = vset.pattern.permute.xlu0 0
        %1253 = vperm.xlu0 %1252, %v1219
        %v1254 = vpop.permute.xlu0 %1253
        %1257 = vset.pattern.permute.xlu0 0
        %1258 = vperm.xlu0 %1257, %v1220
        %v1259 = vpop.permute.xlu0 %1258
        %1262 = vset.pattern.permute.xlu0 0
        %1263 = vperm.xlu0 %1262, %v1221
        %v1264 = vpop.permute.xlu0 %1263
        %1267 = vset.pattern.permute.xlu0 0
        %1268 = vperm.xlu0 %1267, %v1222
        %v1269 = vpop.permute.xlu0 %1268
        %1272 = vset.pattern.permute.xlu0 0
        %1273 = vperm.xlu0 %1272, %v1223
        %v1274 = vpop.permute.xlu0 %1273
        %1277 = vset.pattern.permute.xlu0 0
        %1278 = vperm.xlu0 %1277, %v1224
        %v1279 = vpop.permute.xlu0 %1278
        %1282 = vset.pattern.permute.xlu0 0
        %1283 = vperm.xlu0 %1282, %v1225
        %v1284 = vpop.permute.xlu0 %1283
        %1287 = vset.pattern.permute.xlu0 0
        %1288 = vperm.xlu0 %1287, %v1226
        %v1289 = vpop.permute.xlu0 %1288
        %1292 = vset.pattern.permute.xlu0 0
        %1293 = vperm.xlu0 %1292, %v1227
        %v1294 = vpop.permute.xlu0 %1293
        %1297 = vset.pattern.permute.xlu0 0
        %1298 = vperm.xlu0 %1297, %v1228
        %v1299 = vpop.permute.xlu0 %1298
        %1302 = vset.pattern.permute.xlu0 0
        %1303 = vperm.xlu0 %1302, %v1229
        %v1304 = vpop.permute.xlu0 %1303
        %1307 = vset.pattern.permute.xlu0 0
        %1308 = vperm.xlu0 %1307, %v1230
        %v1309 = vpop.permute.xlu0 %1308
        %v1327 = vunpack.c.l.b16 %v1199
        %v1328 = vunpack.c.l.b16 %v1200
        %v1329 = vunpack.c.l.b16 %v1201
        %v1330 = vunpack.c.l.b16 %v1202
        %v1331 = vunpack.c.l.b16 %v1203
        %v1332 = vunpack.c.l.b16 %v1204
        %v1333 = vunpack.c.l.b16 %v1205
        %v1334 = vunpack.c.l.b16 %v1206
        %v1335 = vunpack.c.l.b16 %v1207
        %v1336 = vunpack.c.l.b16 %v1208
        %v1337 = vunpack.c.l.b16 %v1209
        %v1338 = vunpack.c.l.b16 %v1210
        %v1339 = vunpack.c.l.b16 %v1211
        %v1340 = vunpack.c.l.b16 %v1212
        %v1341 = vunpack.c.l.b16 %v1213
        %v1342 = vunpack.c.l.b16 %v1214
        %v1343 = vpack.c.b16 %v1328, %v1327
        %v1344 = vpack.c.b16 %v1330, %v1329
        %v1345 = vpack.c.b16 %v1332, %v1331
        %v1346 = vpack.c.b16 %v1334, %v1333
        %v1347 = vpack.c.b16 %v1336, %v1335
        %v1348 = vpack.c.b16 %v1338, %v1337
        %v1349 = vpack.c.b16 %v1340, %v1339
        %v1350 = vpack.c.b16 %v1342, %v1341
        %1359 = vmatpush.bf16.xpose.msra.mxu0 %v1198
        %1360 = vmatpush.bf16.xpose.msra.mxu0 %v1197
        %1361 = vmatpush.bf16.xpose.msra.mxu0 %v1196
        %1362 = vmatpush.bf16.xpose.msra.mxu0 %v1195
        %1363 = vmatpush.bf16.xpose.msra.mxu0 %v1194
        %1364 = vmatpush.bf16.xpose.msra.mxu0 %v1193
        %1365 = vmatpush.bf16.xpose.msra.mxu0 %v1192
        %1366 = vmatpush.bf16.xpose.msra.mxu0 %v1191
        %1367 = vmatmul.bf16.gmra.mxu0 %v1343
        %v1368 = vpop.f32.mrf.mxu0
        %v1369 = vadd.f32 %v1234, %v1368
        %v1370 = vpop.f32.mrf.mxu0
        %v1371 = vadd.f32 %v1239, %v1370
        %1372 = vmatmul.bf16.gmra.mxu0 %v1344
        %v1373 = vpop.f32.mrf.mxu0
        %v1374 = vadd.f32 %v1244, %v1373
        %v1375 = vpop.f32.mrf.mxu0
        %v1376 = vadd.f32 %v1249, %v1375
        %1377 = vmatmul.bf16.gmra.mxu0 %v1345
        %v1378 = vpop.f32.mrf.mxu0
        %v1379 = vadd.f32 %v1254, %v1378
        %v1380 = vpop.f32.mrf.mxu0
        %v1381 = vadd.f32 %v1259, %v1380
        %1382 = vmatmul.bf16.gmra.mxu0 %v1346
        %v1383 = vpop.f32.mrf.mxu0
        %v1384 = vadd.f32 %v1264, %v1383
        %v1385 = vpop.f32.mrf.mxu0
        %v1386 = vadd.f32 %v1269, %v1385
        %1387 = vmatmul.bf16.gmra.mxu0 %v1347
        %v1388 = vpop.f32.mrf.mxu0
        %v1389 = vadd.f32 %v1274, %v1388
        %v1390 = vpop.f32.mrf.mxu0
        %v1391 = vadd.f32 %v1279, %v1390
        %1392 = vmatmul.bf16.gmra.mxu0 %v1348
        %v1393 = vpop.f32.mrf.mxu0
        %v1394 = vadd.f32 %v1284, %v1393
        %v1395 = vpop.f32.mrf.mxu0
        %v1396 = vadd.f32 %v1289, %v1395
        %1397 = vmatmul.bf16.gmra.mxu0 %v1349
        %v1398 = vpop.f32.mrf.mxu0
        %v1399 = vadd.f32 %v1294, %v1398
        %v1400 = vpop.f32.mrf.mxu0
        %v1401 = vadd.f32 %v1299, %v1400
        %1402 = vmatmul.bf16.gmra.mxu0 %v1350
        %v1403 = vpop.f32.mrf.mxu0
        %v1404 = vadd.f32 %v1304, %v1403
        %v1405 = vpop.f32.mrf.mxu0
        %v1406 = vadd.f32 %v1309, %v1405
        %1407 = vdwg.mxu0
        %v1408 = vld [vmem:[%s370] sm:$0xff]
        %v1409 = vld [vmem:[%s370 + $0x8] sm:$0xff]
        %v1410 = vld [vmem:[%s370 + $0x10] sm:$0xff]
        %v1411 = vld [vmem:[%s370 + $0x18] sm:$0xff]
        %v1412 = vld [vmem:[%s370 + $0x20] sm:$0xff]
        %v1413 = vld [vmem:[%s370 + $0x28] sm:$0xff]
        %v1414 = vld [vmem:[%s370 + $0x30] sm:$0xff]
        %v1415 = vld [vmem:[%s370 + $0x38] sm:$0xff]
        %v1416 = vld [vmem:[%s370 + $0x40] sm:$0xff]
        %v1417 = vld [vmem:[%s370 + $0x48] sm:$0xff]
        %v1418 = vld [vmem:[%s370 + $0x50] sm:$0xff]
        %v1419 = vld [vmem:[%s370 + $0x58] sm:$0xff]
        %v1420 = vld [vmem:[%s370 + $0x60] sm:$0xff]
        %v1421 = vld [vmem:[%s370 + $0x68] sm:$0xff]
        %v1422 = vld [vmem:[%s370 + $0x70] sm:$0xff]
        %v1423 = vld [vmem:[%s370 + $0x78] sm:$0xff]
        %v1424 = vadd.f32 %v1369, %v1408
        %v1425 = vadd.f32 %v1371, %v1409
        %v1426 = vadd.f32 %v1374, %v1410
        %v1427 = vadd.f32 %v1376, %v1411
        %v1428 = vadd.f32 %v1379, %v1412
        %v1429 = vadd.f32 %v1381, %v1413
        %v1430 = vadd.f32 %v1384, %v1414
        %v1431 = vadd.f32 %v1386, %v1415
        %v1432 = vadd.f32 %v1389, %v1416
        %v1433 = vadd.f32 %v1391, %v1417
        %v1434 = vadd.f32 %v1394, %v1418
        %v1435 = vadd.f32 %v1396, %v1419
        %v1436 = vadd.f32 %v1399, %v1420
        %v1437 = vadd.f32 %v1401, %v1421
        %v1438 = vadd.f32 %v1404, %v1422
        %v1439 = vadd.f32 %v1406, %v1423
        %1440 = vst [vmem:[%s414] sm:$0xff] %v1424
        %1441 = vst [vmem:[%s414 + $0x8] sm:$0xff] %v1425
        %1442 = vst [vmem:[%s414 + $0x10] sm:$0xff] %v1426
        %1443 = vst [vmem:[%s414 + $0x18] sm:$0xff] %v1427
        %1444 = vst [vmem:[%s414 + $0x20] sm:$0xff] %v1428
        %1445 = vst [vmem:[%s414 + $0x28] sm:$0xff] %v1429
        %1446 = vst [vmem:[%s414 + $0x30] sm:$0xff] %v1430
        %1447 = vst [vmem:[%s414 + $0x38] sm:$0xff] %v1431
        %1448 = vst [vmem:[%s414 + $0x40] sm:$0xff] %v1432
        %1449 = vst [vmem:[%s414 + $0x48] sm:$0xff] %v1433
        %1450 = vst [vmem:[%s414 + $0x50] sm:$0xff] %v1434
        %1451 = vst [vmem:[%s414 + $0x58] sm:$0xff] %v1435
        %1452 = vst [vmem:[%s414 + $0x60] sm:$0xff] %v1436
        %1453 = vst [vmem:[%s414 + $0x68] sm:$0xff] %v1437
        %1454 = vst [vmem:[%s414 + $0x70] sm:$0xff] %v1438
        %1455 = vst [vmem:[%s414 + $0x78] sm:$0xff] %v1439
        %s1456 = sand.u32 %s189, 1
        %s1457 = sand.u32 %s189, 1
        %s1458 = smul.addr %s1457, 128
        %s1459 = scalar_lea.vmem [#allocation3], %s1458
        // Predicated region
        $region83: #{vae_attention_block.3} parent=77 // pred_check
          %p1460 = pneg %p199
        $region84: #{vae_attention_block.3} parent=77 // pred_check_branch
          %1462 = sbr.rel (%p1460) target = $region86
        $region85: #{vae_attention_block.3} parent=77 // pred_region
          %s1463 = smul.addr %s21, 32
          %s1464 = sadd.s32 %s22, %s1463
          %s1465 = smul.addr %s1464, 8
          %s1466 = scalar_lea.vmem %s6, %s1465
          // Predicated region
          $region87: #{vae_attention_block.3} parent=85 // pred_check
            _
          $region88: #{vae_attention_block.3} parent=85 // pred_check_branch
            %1468 = sbr.rel (0) target = $region90
          $region89: #{vae_attention_block.3} parent=85 // pred_region
            // Predicated region
            $region91: #{vae_attention_block.3} parent=89 // pred_check
              _
            $region92: #{vae_attention_block.3} parent=89 // pred_check_branch
              %1470 = sbr.rel (0) target = $region94
            $region93: #{vae_attention_block.3} parent=89 // pred_region
              // Predicated region
              $region106: #{vae_attention_block.3} parent=93 // pred_check
                _
              $region107: #{vae_attention_block.3} parent=93 // pred_check_branch
                %1516 = sbr.rel (0) target = $region109
              $region108: #{vae_attention_block.3} parent=93 // pred_region
                loop: start=0, step=1, limit=1
                $region110: #{vae_attention_block.3} parent=108 // loop_pre_header
                  _
                $region111: #{vae_attention_block.3} parent=108 // loop_header
                  %s1518 = sphi 0, %s1522
                  %p1519 = scmp.ge.s32.totalorder %s1518, 1
                  %s1523 = sphi %s1459, %s1459
                  %s1524 = sphi %s1466, %s1466
                $region112: #{vae_attention_block.3} parent=108 // loop_header_branch
                  %1521 = sbr.rel (%p1519) target = $region116
                $region113: #{vae_attention_block.3} parent=108 // loop_body
                  %v1525 = vld [vmem:[%s1523] sm:$0xff]
                  %1526 = vst [vmem:[%s1524] sm:$0xff] %v1525
                  %v1527 = vld [vmem:[%s1523 + $0x8] sm:$0xff]
                  %1528 = vst [vmem:[%s1524 + $0x10] sm:$0xff] %v1527
                  %v1529 = vld [vmem:[%s1523 + $0x10] sm:$0xff]
                  %1530 = vst [vmem:[%s1524 + $0x20] sm:$0xff] %v1529
                  %v1531 = vld [vmem:[%s1523 + $0x18] sm:$0xff]
                  %1532 = vst [vmem:[%s1524 + $0x30] sm:$0xff] %v1531
                  %v1533 = vld [vmem:[%s1523 + $0x20] sm:$0xff]
                  %1534 = vst [vmem:[%s1524 + $0x40] sm:$0xff] %v1533
                  %v1535 = vld [vmem:[%s1523 + $0x28] sm:$0xff]
                  %1536 = vst [vmem:[%s1524 + $0x50] sm:$0xff] %v1535
                  %v1537 = vld [vmem:[%s1523 + $0x30] sm:$0xff]
                  %1538 = vst [vmem:[%s1524 + $0x60] sm:$0xff] %v1537
                  %v1539 = vld [vmem:[%s1523 + $0x38] sm:$0xff]
                  %1540 = vst [vmem:[%s1524 + $0x70] sm:$0xff] %v1539
                  %v1541 = vld [vmem:[%s1523 + $0x40] sm:$0xff]
                  %1542 = vst [vmem:[%s1524 + $0x80] sm:$0xff] %v1541
                  %v1543 = vld [vmem:[%s1523 + $0x48] sm:$0xff]
                  %1544 = vst [vmem:[%s1524 + $0x90] sm:$0xff] %v1543
                  %v1545 = vld [vmem:[%s1523 + $0x50] sm:$0xff]
                  %1546 = vst [vmem:[%s1524 + $0xa0] sm:$0xff] %v1545
                  %v1547 = vld [vmem:[%s1523 + $0x58] sm:$0xff]
                  %1548 = vst [vmem:[%s1524 + $0xb0] sm:$0xff] %v1547
                  %v1549 = vld [vmem:[%s1523 + $0x60] sm:$0xff]
                  %1550 = vst [vmem:[%s1524 + $0xc0] sm:$0xff] %v1549
                  %v1551 = vld [vmem:[%s1523 + $0x68] sm:$0xff]
                  %1552 = vst [vmem:[%s1524 + $0xd0] sm:$0xff] %v1551
                  %v1553 = vld [vmem:[%s1523 + $0x70] sm:$0xff]
                  %1554 = vst [vmem:[%s1524 + $0xe0] sm:$0xff] %v1553
                  %v1555 = vld [vmem:[%s1523 + $0x78] sm:$0xff]
                  %1556 = vst [vmem:[%s1524 + $0xf0] sm:$0xff] %v1555
                $region114: #{vae_attention_block.3} parent=108 // loop_footer
                  %s1522 = sadd.s32 1, %s1518
                $region115: #{vae_attention_block.3} parent=108 // loop_footer_branch
                  %1517 = sbr.rel target = $region111
                $region116: #{vae_attention_block.3} parent=108 // loop_exit
                  _
              $region109: #{vae_attention_block.3} parent=93 // pred_fallthru
                _
              // Predicated region
              $region117: #{vae_attention_block.3} parent=93 // pred_check
                _
              $region118: #{vae_attention_block.3} parent=93 // pred_check_branch
                %1558 = sbr.rel target = $region120
              $region119: #{vae_attention_block.3} parent=93 // pred_region
                _
              $region120: #{vae_attention_block.3} parent=93 // pred_fallthru
                _
            $region94: #{vae_attention_block.3} parent=89 // pred_fallthru
              _
            // Predicated region
            $region95: #{vae_attention_block.3} parent=89 // pred_check
              _
            $region96: #{vae_attention_block.3} parent=89 // pred_check_branch
              %1472 = sbr.rel target = $region98
            $region97: #{vae_attention_block.3} parent=89 // pred_region
              %s1474 = ssub.s32 256, 1
              loop: start=0, step=1, limit=1
              $region99: #{vae_attention_block.3} parent=97 // loop_pre_header
                _
              $region100: #{vae_attention_block.3} parent=97 // loop_header
                %s1476 = sphi 0, %s1480
                %p1477 = scmp.ge.s32.totalorder %s1476, 1
                %s1481 = sphi %s1459, %s1459
                %s1482 = sphi %s1466, %s1466
              $region101: #{vae_attention_block.3} parent=97 // loop_header_branch
                %1479 = sbr.rel (%p1477) target = $region105
              $region102: #{vae_attention_block.3} parent=97 // loop_body
                %v1483 = vld [vmem:[%s1481] sm:%s1474]
                %1484 = vst [vmem:[%s1482] sm:%s1474] %v1483
                %v1485 = vld [vmem:[%s1481 + $0x8] sm:%s1474]
                %1486 = vst [vmem:[%s1482 + $0x10] sm:%s1474] %v1485
                %v1487 = vld [vmem:[%s1481 + $0x10] sm:%s1474]
                %1488 = vst [vmem:[%s1482 + $0x20] sm:%s1474] %v1487
                %v1489 = vld [vmem:[%s1481 + $0x18] sm:%s1474]
                %1490 = vst [vmem:[%s1482 + $0x30] sm:%s1474] %v1489
                %v1491 = vld [vmem:[%s1481 + $0x20] sm:%s1474]
                %1492 = vst [vmem:[%s1482 + $0x40] sm:%s1474] %v1491
                %v1493 = vld [vmem:[%s1481 + $0x28] sm:%s1474]
                %1494 = vst [vmem:[%s1482 + $0x50] sm:%s1474] %v1493
                %v1495 = vld [vmem:[%s1481 + $0x30] sm:%s1474]
                %1496 = vst [vmem:[%s1482 + $0x60] sm:%s1474] %v1495
                %v1497 = vld [vmem:[%s1481 + $0x38] sm:%s1474]
                %1498 = vst [vmem:[%s1482 + $0x70] sm:%s1474] %v1497
                %v1499 = vld [vmem:[%s1481 + $0x40] sm:%s1474]
                %1500 = vst [vmem:[%s1482 + $0x80] sm:%s1474] %v1499
                %v1501 = vld [vmem:[%s1481 + $0x48] sm:%s1474]
                %1502 = vst [vmem:[%s1482 + $0x90] sm:%s1474] %v1501
                %v1503 = vld [vmem:[%s1481 + $0x50] sm:%s1474]
                %1504 = vst [vmem:[%s1482 + $0xa0] sm:%s1474] %v1503
                %v1505 = vld [vmem:[%s1481 + $0x58] sm:%s1474]
                %1506 = vst [vmem:[%s1482 + $0xb0] sm:%s1474] %v1505
                %v1507 = vld [vmem:[%s1481 + $0x60] sm:%s1474]
                %1508 = vst [vmem:[%s1482 + $0xc0] sm:%s1474] %v1507
                %v1509 = vld [vmem:[%s1481 + $0x68] sm:%s1474]
                %1510 = vst [vmem:[%s1482 + $0xd0] sm:%s1474] %v1509
                %v1511 = vld [vmem:[%s1481 + $0x70] sm:%s1474]
                %1512 = vst [vmem:[%s1482 + $0xe0] sm:%s1474] %v1511
                %v1513 = vld [vmem:[%s1481 + $0x78] sm:%s1474]
                %1514 = vst [vmem:[%s1482 + $0xf0] sm:%s1474] %v1513
              $region103: #{vae_attention_block.3} parent=97 // loop_footer
                %s1480 = sadd.s32 1, %s1476
              $region104: #{vae_attention_block.3} parent=97 // loop_footer_branch
                %1475 = sbr.rel target = $region100
              $region105: #{vae_attention_block.3} parent=97 // loop_exit
                _
            $region98: #{vae_attention_block.3} parent=89 // pred_fallthru
              _
          $region90: #{vae_attention_block.3} parent=85 // pred_fallthru
            _
          %1559 = vnop
        $region86: #{vae_attention_block.3} parent=77 // pred_fallthru
          _
      $region78: #{vae_attention_block.3} parent=5 // pred_fallthru
        _
      %p1560 = scmp.le.s32.totalorder 2, %s12
      // Predicated region
      $region121: #{vae_attention_block.3} parent=5 // pred_check
        %p1561 = pneg %p1560
      $region122: #{vae_attention_block.3} parent=5 // pred_check_branch
        %1563 = sbr.rel (%p1561) target = $region124
      $region123: #{vae_attention_block.3} parent=5 // pred_region
        %s1564 = ssub.s32 %s12, 2
        // Predicated region
        $region125: #{vae_attention_block.3} parent=123 // pred_check
          %p1565 = pneg %p205
        $region126: #{vae_attention_block.3} parent=123 // pred_check_branch
          %1567 = sbr.rel (%p1565) target = $region128
        $region127: #{vae_attention_block.3} parent=123 // pred_region
          %s1568 = sand.u32 %s190, 1
          %s1569 = sand.u32 %s190, 1
          %s1570 = smul.addr %s1569, 128
          %s1571 = scalar_lea.vmem [#allocation3], %s1570
        $region128: #{vae_attention_block.3} parent=123 // pred_fallthru
          _
      $region124: #{vae_attention_block.3} parent=5 // pred_fallthru
        _
    $region6: #{vae_attention_block.3} parent=1 // loop_footer
      %s16 = sadd.s32 1, %s12
    $region7: #{vae_attention_block.3} parent=1 // loop_footer_branch
      %11 = sbr.rel target = $region3
    $region8: #{vae_attention_block.3} parent=1 // loop_exit
      _

</llo_original>
